<compile_context>
chip_gen: v6e
topology: v6e:2x2x1
jax: 0.10.0
libtpu: 0.0.40
codegen_flags: <defaults>
</compile_context>

<pallas_src>
import jax
import jax.numpy as jnp
from jax.experimental import pallas as pl
from jax.experimental.pallas import tpu as pltpu

HIDDEN = 512


def decoder_kernel(z_ref, w1_ref, b1_ref, w2_ref, b2_ref, w3_ref, b3_ref, out_ref):
    bf16 = jnp.bfloat16

    # Layer 1: Linear + ReLU  (bf16 operands, f32 accumulate)
    h1 = jnp.dot(z_ref[...].astype(bf16), w1_ref[...],
                 preferred_element_type=jnp.float32)
    h1 = jnp.maximum(h1 + b1_ref[...], 0.0)          # b1 is [1, 512], broadcasts

    # Layer 2: Linear (no activation)
    h2 = jnp.dot(h1.astype(bf16), w2_ref[...],
                 preferred_element_type=jnp.float32)
    h2 = h2 + b2_ref[...]

    # Layer 3: Linear + sigmoid
    h3 = jnp.dot(h2.astype(bf16), w3_ref[...],
                 preferred_element_type=jnp.float32)
    h3 = h3 + b3_ref[...]
    out_ref[...] = jax.nn.sigmoid(h3).astype(out_ref.dtype)


def decoder_net_forward(z, params, tb=128):
    """Fused DecoderNet forward. z: [B, z_dim] f32. Weights bf16 [in, out], biases f32 [1, out]."""
    w1, b1, w2, b2, w3, b3 = (
        params["w1"], params["b1"], params["w2"],
        params["b2"], params["w3"], params["b3"],
    )
    B, z_dim = z.shape
    x_dim = w3.shape[1]

    # Batch tile: multiple of 8, never larger than needed for tiny batches.
    tb = min(tb, max(8, ((B + 7) // 8) * 8))
    b_pad = pl.cdiv(B, tb) * tb
    # Lane-dense output: round x_dim up to a multiple of 128 (unmasked stores).
    x_pad = pl.cdiv(x_dim, 128) * 128

    if b_pad != B:
        z = jnp.pad(z, ((0, b_pad - B), (0, 0)))
    if x_pad != x_dim:
        w3 = jnp.pad(w3, ((0, 0), (0, x_pad - x_dim)))
        b3 = jnp.pad(b3, ((0, 0), (0, x_pad - x_dim)))

    grid = (b_pad // tb,)
    # Weights / biases: same block every grid step -> loaded once, stay resident.
    resident = lambda a: pl.BlockSpec(a.shape, lambda i: (0, 0))

    out = pl.pallas_call(
        decoder_kernel,
        out_shape=jax.ShapeDtypeStruct((b_pad, x_pad), jnp.float32),
        grid=grid,
        in_specs=[
            pl.BlockSpec((tb, z_dim), lambda i: (i, 0)),   # z: tiled over batch
            resident(w1), resident(b1),
            resident(w2), resident(b2),
            resident(w3), resident(b3),
        ],
        out_specs=pl.BlockSpec((tb, x_pad), lambda i: (i, 0)),
        compiler_params=pltpu.CompilerParams(
            dimension_semantics=("parallel",),
        ),
    )(z, w1, b1, w2, b2, w3, b3)

    return {"sigmoid_x": out[:B, :x_dim]}


def init_decoder_params(key, z_dim, x_dim, hidden=HIDDEN):
    """PyTorch nn.Linear-style init U[-1/sqrt(fan_in), 1/sqrt(fan_in)].
    Weights stored [in, out] in bf16 (matmul operands); biases f32 [1, out]."""
    ks = jax.random.split(key, 6)

    def lin(kw, kb, fan_in, fan_out):
        bound = 1.0 / jnp.sqrt(fan_in)
        w = jax.random.uniform(kw, (fan_in, fan_out), jnp.float32, -bound, bound)
        b = jax.random.uniform(kb, (1, fan_out), jnp.float32, -bound, bound)
        return w.astype(jnp.bfloat16), b

    w1, b1 = lin(ks[0], ks[1], z_dim, hidden)
    w2, b2 = lin(ks[2], ks[3], hidden, hidden)
    w3, b3 = lin(ks[4], ks[5], hidden, x_dim)
    return {"w1": w1, "b1": b1, "w2": w2, "b2": b2, "w3": w3, "b3": b3}


def _ref_forward(z, params):
    """Pure-JAX reference mirroring the kernel's bf16-operand / f32-accumulate math."""
    bf16 = jnp.bfloat16
    h1 = jnp.dot(z.astype(bf16), params["w1"], preferred_element_type=jnp.float32)
    h1 = jnp.maximum(h1 + params["b1"], 0.0)
    h2 = jnp.dot(h1.astype(bf16), params["w2"], preferred_element_type=jnp.float32)
    h2 = h2 + params["b2"]
    h3 = jnp.dot(h2.astype(bf16), params["w3"], preferred_element_type=jnp.float32)
    h3 = h3 + params["b3"]
    return jax.nn.sigmoid(h3)


if __name__ == "__main__":
    key = jax.random.PRNGKey(0)
    k_param, k_z = jax.random.split(key)

    B, z_dim, x_dim = 16, 32, 64
    params = init_decoder_params(k_param, z_dim=z_dim, x_dim=x_dim)
    z = jax.random.normal(k_z, (B, z_dim), dtype=jnp.float32)

    # tb=8 -> 2 batch tiles, exercises the pipelined batch grid at small B.
    out = decoder_net_forward(z, params, tb=8)
    sigmoid_x = jax.block_until_ready(out["sigmoid_x"])

    ref = _ref_forward(z, params)
    assert sigmoid_x.shape == (B, x_dim)
    assert jnp.allclose(sigmoid_x, ref, atol=1e-4, rtol=1e-4), (
        float(jnp.max(jnp.abs(sigmoid_x - ref))))

    print("KERNEL_OK")
</pallas_src>

<mosaic_0001>
module attributes {stable_mosaic.version = 11 : i64} {
  func.func @decoder_kernel(%arg0: i32, %arg1: memref<8x32xf32, #tpu.memory_space<vmem>>, %arg2: memref<32x512xbf16, #tpu.memory_space<vmem>>, %arg3: memref<1x512xf32, #tpu.memory_space<vmem>>, %arg4: memref<512x512xbf16, #tpu.memory_space<vmem>>, %arg5: memref<1x512xf32, #tpu.memory_space<vmem>>, %arg6: memref<512x128xbf16, #tpu.memory_space<vmem>>, %arg7: memref<1x128xf32, #tpu.memory_space<vmem>>, %arg8: memref<8x128xf32, #tpu.memory_space<vmem>>) attributes {dimension_semantics = [#tpu.dimension_semantics<parallel>], iteration_bounds = array<i64: 2>, scalar_prefetch = 0 : i64, scratch_operands = 0 : i64, tpu.core_type = #tpu.core_type<tc>, window_params = [{transform_indices = @transform_0, window_bounds = array<i64: 8, 32>}, {pipeline_mode = #tpu.pipeline_mode<synchronous>, transform_indices = @transform_1, window_bounds = array<i64: 32, 512>}, {pipeline_mode = #tpu.pipeline_mode<synchronous>, transform_indices = @transform_2, window_bounds = array<i64: 1, 512>}, {pipeline_mode = #tpu.pipeline_mode<synchronous>, transform_indices = @transform_3, window_bounds = array<i64: 512, 512>}, {pipeline_mode = #tpu.pipeline_mode<synchronous>, transform_indices = @transform_4, window_bounds = array<i64: 1, 512>}, {pipeline_mode = #tpu.pipeline_mode<synchronous>, transform_indices = @transform_5, window_bounds = array<i64: 512, 128>}, {pipeline_mode = #tpu.pipeline_mode<synchronous>, transform_indices = @transform_6, window_bounds = array<i64: 1, 128>}, {transform_indices = @transform_7, window_bounds = array<i64: 8, 128>}]} {
    %c0 = arith.constant 0 : index
    %c0_0 = arith.constant 0 : index
    %0 = vector.load %arg1[%c0, %c0_0] : memref<8x32xf32, #tpu.memory_space<vmem>>, vector<8x32xf32>
    %1 = arith.truncf %0 : vector<8x32xf32> to vector<8x32xbf16>
    %c0_1 = arith.constant 0 : index
    %c0_2 = arith.constant 0 : index
    %2 = vector.load %arg2[%c0_1, %c0_2] : memref<32x512xbf16, #tpu.memory_space<vmem>>, vector<32x512xbf16>
    %cst = arith.constant dense<0.000000e+00> : vector<8x512xf32>
    %3 = tpu.matmul %1, %2, %cst {dimension_numbers = #tpu.dot_dimension_numbers<[1], [0], [0], [1], [0, 0, 1, 1], [], []>} : vector<8x32xbf16>, vector<32x512xbf16>, vector<8x512xf32> -> vector<8x512xf32>
    %c0_3 = arith.constant 0 : index
    %c0_4 = arith.constant 0 : index
    %4 = vector.load %arg3[%c0_3, %c0_4] : memref<1x512xf32, #tpu.memory_space<vmem>>, vector<1x512xf32>
    %5 = vector.broadcast %4 : vector<1x512xf32> to vector<8x512xf32>
    %6 = arith.addf %3, %5 : vector<8x512xf32>
    %cst_5 = arith.constant 0.000000e+00 : f32
    %7 = vector.broadcast %cst_5 : f32 to vector<8x512xf32>
    %8 = arith.maximumf %6, %7 : vector<8x512xf32>
    %9 = arith.truncf %8 : vector<8x512xf32> to vector<8x512xbf16>
    %c0_6 = arith.constant 0 : index
    %c0_7 = arith.constant 0 : index
    %10 = vector.load %arg4[%c0_6, %c0_7] : memref<512x512xbf16, #tpu.memory_space<vmem>>, vector<512x512xbf16>
    %cst_8 = arith.constant dense<0.000000e+00> : vector<8x512xf32>
    %11 = tpu.matmul %9, %10, %cst_8 {dimension_numbers = #tpu.dot_dimension_numbers<[1], [0], [0], [1], [0, 0, 1, 1], [], []>} : vector<8x512xbf16>, vector<512x512xbf16>, vector<8x512xf32> -> vector<8x512xf32>
    %c0_9 = arith.constant 0 : index
    %c0_10 = arith.constant 0 : index
    %12 = vector.load %arg5[%c0_9, %c0_10] : memref<1x512xf32, #tpu.memory_space<vmem>>, vector<1x512xf32>
    %13 = vector.broadcast %12 : vector<1x512xf32> to vector<8x512xf32>
    %14 = arith.addf %11, %13 : vector<8x512xf32>
    %15 = arith.truncf %14 : vector<8x512xf32> to vector<8x512xbf16>
    %c0_11 = arith.constant 0 : index
    %c0_12 = arith.constant 0 : index
    %16 = vector.load %arg6[%c0_11, %c0_12] : memref<512x128xbf16, #tpu.memory_space<vmem>>, vector<512x128xbf16>
    %cst_13 = arith.constant dense<0.000000e+00> : vector<8x128xf32>
    %17 = tpu.matmul %15, %16, %cst_13 {dimension_numbers = #tpu.dot_dimension_numbers<[1], [0], [0], [1], [0, 0, 1, 1], [], []>} : vector<8x512xbf16>, vector<512x128xbf16>, vector<8x128xf32> -> vector<8x128xf32>
    %c0_14 = arith.constant 0 : index
    %c0_15 = arith.constant 0 : index
    %18 = vector.load %arg7[%c0_14, %c0_15] : memref<1x128xf32, #tpu.memory_space<vmem>>, vector<1x128xf32>
    %19 = vector.broadcast %18 : vector<1x128xf32> to vector<8x128xf32>
    %20 = arith.addf %17, %19 : vector<8x128xf32>
    %21 = arith.negf %20 : vector<8x128xf32>
    %22 = math.exp %21 : vector<8x128xf32>
    %cst_16 = arith.constant 1.000000e+00 : f32
    %23 = vector.broadcast %cst_16 : f32 to vector<8x128xf32>
    %24 = arith.addf %23, %22 : vector<8x128xf32>
    %25 = arith.divf %23, %24 : vector<8x128xf32>
    %c0_17 = arith.constant 0 : index
    %c0_18 = arith.constant 0 : index
    %26 = vector.load %arg8[%c0_17, %c0_18] : memref<8x128xf32, #tpu.memory_space<vmem>>, vector<8x128xf32>
    tpu.vector_store %arg8[%c0_17, %c0_18], %25 {strides = array<i32>} : memref<8x128xf32, #tpu.memory_space<vmem>>, vector<8x128xf32>,
    return
  }
  func.func @transform_0(%arg0: i32) -> (i32, i32) {
    %c0_i32 = arith.constant 0 : i32
    %c0_i32_0 = arith.constant 0 : i32
    return %arg0, %c0_i32 : i32, i32
  }
  func.func @transform_1(%arg0: i32) -> (i32, i32) {
    %c0_i32 = arith.constant 0 : i32
    %c0_i32_0 = arith.constant 0 : i32
    %c0_i32_1 = arith.constant 0 : i32
    return %c0_i32, %c0_i32_0 : i32, i32
  }
  func.func @transform_2(%arg0: i32) -> (i32, i32) {
    %c0_i32 = arith.constant 0 : i32
    %c0_i32_0 = arith.constant 0 : i32
    %c0_i32_1 = arith.constant 0 : i32
    return %c0_i32, %c0_i32_0 : i32, i32
  }
  func.func @transform_3(%arg0: i32) -> (i32, i32) {
    %c0_i32 = arith.constant 0 : i32
    %c0_i32_0 = arith.constant 0 : i32
    %c0_i32_1 = arith.constant 0 : i32
    return %c0_i32, %c0_i32_0 : i32, i32
  }
  func.func @transform_4(%arg0: i32) -> (i32, i32) {
    %c0_i32 = arith.constant 0 : i32
    %c0_i32_0 = arith.constant 0 : i32
    %c0_i32_1 = arith.constant 0 : i32
    return %c0_i32, %c0_i32_0 : i32, i32
  }
  func.func @transform_5(%arg0: i32) -> (i32, i32) {
    %c0_i32 = arith.constant 0 : i32
    %c0_i32_0 = arith.constant 0 : i32
    %c0_i32_1 = arith.constant 0 : i32
    return %c0_i32, %c0_i32_0 : i32, i32
  }
  func.func @transform_6(%arg0: i32) -> (i32, i32) {
    %c0_i32 = arith.constant 0 : i32
    %c0_i32_0 = arith.constant 0 : i32
    %c0_i32_1 = arith.constant 0 : i32
    return %c0_i32, %c0_i32_0 : i32, i32
  }
  func.func @transform_7(%arg0: i32) -> (i32, i32) {
    %c0_i32 = arith.constant 0 : i32
    %c0_i32_0 = arith.constant 0 : i32
    return %arg0, %c0_i32 : i32, i32
  }
}

</mosaic_0001>

<llo_original>
// kernel: tpu_custom_call.1
$region0: #{tpu_custom_call.1}
  #allocation0 [shape = 'u32[]', space=smem, size = 0x4, offset = 0x4, fixed_abs, tag = 'smem constant byte address 0x4 - core index']
  #allocation1 [shape = 'u32[144,128]{1,0:T(1,128)}', space=vmem, size = 0x12000, scoped, tag = 'internal scratch']
  %s0 = inlined_call_operand.hbm [shape: f32[16,32], index: 0, kind: input, shape index: {}]
  %s1 = inlined_call_operand.hbm [shape: bf16[32,512], index: 1, kind: input, shape index: {}]
  %s2 = inlined_call_operand.hbm [shape: f32[1,512], index: 2, kind: input, shape index: {}]
  %s3 = inlined_call_operand.hbm [shape: bf16[512,512], index: 3, kind: input, shape index: {}]
  %s4 = inlined_call_operand.vmem [shape: f32[1,512], index: 4, kind: input, shape index: {}]
  %s5 = inlined_call_operand.hbm [shape: bf16[512,128], index: 5, kind: input, shape index: {}]
  %s6 = inlined_call_operand.vmem [shape: f32[1,128], index: 6, kind: input, shape index: {}]
  %s7 = inlined_call_operand.hbm [shape: f32[16,128], index: 7, kind: output, shape index: {}]
  %s8 = sld [smem:[#allocation0]]
  $region81: #{tpu_custom_call.1} parent=0
    _
  %s10 = ssub.s32 1, %s8
  %s11 = scalar_select 0, %s10, %s8
  $region1: #{tpu_custom_call.1} parent=0
    #allocation2 [shape = 'u8[8192]{0}', space=vmem, size = 0x2000, scoped, tag = 'input window, operand 0']
    #allocation3 [shape = 's32[2]{0}', space=sflag, size = 0x8, scoped, tag = 'scoped memory for tpu_custom_call.1']
    #allocation4 [shape = 's32[2]{0}', space=sflag, size = 0x8, scoped, tag = 'scoped memory for tpu_custom_call.1']
    #allocation5 [shape = 'u8[32768]{0}', space=vmem, size = 0x8000, scoped, tag = 'input window, operand 1, single buffered']
    #allocation6 [shape = 's32[1]{0}', space=sflag, size = 0x4, scoped, tag = 'scoped memory for tpu_custom_call.1']
    #allocation7 [shape = 'u8[2048]{0}', space=vmem, size = 0x800, scoped, tag = 'input window, operand 2, single buffered']
    #allocation8 [shape = 'u8[524288]{0}', space=vmem, size = 0x80000, scoped, tag = 'input window, operand 3, single buffered']
    #allocation9 [shape = 's32[1]{0}', space=sflag, size = 0x4, scoped, tag = 'scoped memory for tpu_custom_call.1']
    #allocation10 [shape = 'u8[131072]{0}', space=vmem, size = 0x20000, scoped, tag = 'input window, operand 5, single buffered']
    #allocation11 [shape = 'u8[8192]{0}', space=vmem, size = 0x2000, scoped, tag = 'output window, operand 0']
    %12 = vsyncpa [#allocation3], 0
    %s13 = scalar_lea.sflag [#allocation3], 1
    %14 = vsyncpa %s13, 0
    %15 = vsyncpa [#allocation6], 0
    %16 = vsyncpa [#allocation9], 0
    %17 = vsyncpa [#allocation4], 0
    %s18 = scalar_lea.sflag [#allocation4], 1
    %19 = vsyncpa %s18, 0
    loop: start=0, step=1, limit=4
    $region2: #{tpu_custom_call.1} parent=1 // loop_pre_header
      _
    $region3: #{tpu_custom_call.1} parent=1 // loop_header
      %s21 = sphi 0, %s25
      %p22 = scmp.ge.s32.totalorder %s21, 4
      %s31 = sphi 0, %s33
      %s34 = sphi 0, %s31
      %s35 = sphi 0, %s34
      %s51 = sphi 0, %s35
      %s55 = sphi 0, %s55
      %s57 = sphi 0, %s55
      %s58 = sphi 0, %s57
      %s72 = sphi 0, %s58
      %s76 = sphi 0, %s76
      %s78 = sphi 0, %s76
      %s79 = sphi 0, %s78
      %s93 = sphi 0, %s79
      %s97 = sphi 0, %s97
      %s99 = sphi 0, %s97
      %s100 = sphi 0, %s99
      %s114 = sphi 0, %s100
      %s118 = sphi 0, %s118
      %s120 = sphi 0, %s118
      %s121 = sphi 0, %s120
      %s135 = sphi 0, %s121
      %s139 = sphi 0, %s139
      %s141 = sphi 0, %s139
      %s142 = sphi 0, %s141
      %s156 = sphi 0, %s142
      %s160 = sphi 0, %s160
      %s162 = sphi 0, %s160
      %s163 = sphi 0, %s162
      %s177 = sphi 0, %s163
      %s183 = sphi 0, %s185
      %s186 = sphi 0, %s183
      %s187 = sphi 0, %s186
      %s203 = sphi 0, %s187
    $region4: #{tpu_custom_call.1} parent=1 // loop_header_branch
      %24 = sbr.rel (%p22) target = $region8
    $region5: #{tpu_custom_call.1} parent=1 // loop_body
      %s26 = ssub.s32 %s21, 1
      %s27 = ssub.s32 %s21, 2
      %s28 = sadd.s32 %s21, 1
      %s29 = ssub.s32 %s21, %s28
      %p30 = scmp.eq.s32.totalorder %s29, 0
      %s32 = sadd.s32 %s31, 1
      %s33 = scalar_select %p30, %s31, %s32
      %p36 = pneg %p30
      %p37 = scmp.eq.s32.totalorder %s21, 1
      %p38 = por %p36, %p37
      %p39 = scmp.ne.s32.totalorder %s31, %s34
      %p40 = scmp.eq.s32.totalorder %s21, 0
      %p41 = por %p39, %p40
      %p42 = scmp.ne.s32.totalorder %s31, %s34
      %p43 = scmp.eq.s32.totalorder %s26, 1
      %p44 = por %p42, %p43
      %p45 = scmp.ne.s32.totalorder %s34, %s35
      %p46 = scmp.eq.s32.totalorder %s26, 0
      %p47 = por %p45, %p46
      %p48 = scmp.ne.s32.totalorder %s34, %s35
      %p49 = scmp.eq.s32.totalorder %s27, 1
      %p50 = por %p48, %p49
      %p52 = scmp.ne.s32.totalorder %s35, %s51
      %p53 = scmp.eq.s32.totalorder %s27, 0
      %p54 = por %p52, %p53
      %s56 = sadd.s32 %s55, 1
      %p59 = scmp.eq.s32.totalorder %s21, 1
      %p60 = scmp.ne.s32.totalorder %s55, %s57
      %p61 = scmp.eq.s32.totalorder %s21, 0
      %p62 = por %p60, %p61
      %p63 = scmp.ne.s32.totalorder %s55, %s57
      %p64 = scmp.eq.s32.totalorder %s26, 1
      %p65 = por %p63, %p64
      %p66 = scmp.ne.s32.totalorder %s57, %s58
      %p67 = scmp.eq.s32.totalorder %s26, 0
      %p68 = por %p66, %p67
      %p69 = scmp.ne.s32.totalorder %s57, %s58
      %p70 = scmp.eq.s32.totalorder %s27, 1
      %p71 = por %p69, %p70
      %p73 = scmp.ne.s32.totalorder %s58, %s72
      %p74 = scmp.eq.s32.totalorder %s27, 0
      %p75 = por %p73, %p74
      %s77 = sadd.s32 %s76, 1
      %p80 = scmp.eq.s32.totalorder %s21, 1
      %p81 = scmp.ne.s32.totalorder %s76, %s78
      %p82 = scmp.eq.s32.totalorder %s21, 0
      %p83 = por %p81, %p82
      %p84 = scmp.ne.s32.totalorder %s76, %s78
      %p85 = scmp.eq.s32.totalorder %s26, 1
      %p86 = por %p84, %p85
      %p87 = scmp.ne.s32.totalorder %s78, %s79
      %p88 = scmp.eq.s32.totalorder %s26, 0
      %p89 = por %p87, %p88
      %p90 = scmp.ne.s32.totalorder %s78, %s79
      %p91 = scmp.eq.s32.totalorder %s27, 1
      %p92 = por %p90, %p91
      %p94 = scmp.ne.s32.totalorder %s79, %s93
      %p95 = scmp.eq.s32.totalorder %s27, 0
      %p96 = por %p94, %p95
      %s98 = sadd.s32 %s97, 1
      %p101 = scmp.eq.s32.totalorder %s21, 1
      %p102 = scmp.ne.s32.totalorder %s97, %s99
      %p103 = scmp.eq.s32.totalorder %s21, 0
      %p104 = por %p102, %p103
      %p105 = scmp.ne.s32.totalorder %s97, %s99
      %p106 = scmp.eq.s32.totalorder %s26, 1
      %p107 = por %p105, %p106
      %p108 = scmp.ne.s32.totalorder %s99, %s100
      %p109 = scmp.eq.s32.totalorder %s26, 0
      %p110 = por %p108, %p109
      %p111 = scmp.ne.s32.totalorder %s99, %s100
      %p112 = scmp.eq.s32.totalorder %s27, 1
      %p113 = por %p111, %p112
      %p115 = scmp.ne.s32.totalorder %s100, %s114
      %p116 = scmp.eq.s32.totalorder %s27, 0
      %p117 = por %p115, %p116
      %s119 = sadd.s32 %s118, 1
      %p122 = scmp.eq.s32.totalorder %s21, 1
      %p123 = scmp.ne.s32.totalorder %s118, %s120
      %p124 = scmp.eq.s32.totalorder %s21, 0
      %p125 = por %p123, %p124
      %p126 = scmp.ne.s32.totalorder %s118, %s120
      %p127 = scmp.eq.s32.totalorder %s26, 1
      %p128 = por %p126, %p127
      %p129 = scmp.ne.s32.totalorder %s120, %s121
      %p130 = scmp.eq.s32.totalorder %s26, 0
      %p131 = por %p129, %p130
      %p132 = scmp.ne.s32.totalorder %s120, %s121
      %p133 = scmp.eq.s32.totalorder %s27, 1
      %p134 = por %p132, %p133
      %p136 = scmp.ne.s32.totalorder %s121, %s135
      %p137 = scmp.eq.s32.totalorder %s27, 0
      %p138 = por %p136, %p137
      %s140 = sadd.s32 %s139, 1
      %p143 = scmp.eq.s32.totalorder %s21, 1
      %p144 = scmp.ne.s32.totalorder %s139, %s141
      %p145 = scmp.eq.s32.totalorder %s21, 0
      %p146 = por %p144, %p145
      %p147 = scmp.ne.s32.totalorder %s139, %s141
      %p148 = scmp.eq.s32.totalorder %s26, 1
      %p149 = por %p147, %p148
      %p150 = scmp.ne.s32.totalorder %s141, %s142
      %p151 = scmp.eq.s32.totalorder %s26, 0
      %p152 = por %p150, %p151
      %p153 = scmp.ne.s32.totalorder %s141, %s142
      %p154 = scmp.eq.s32.totalorder %s27, 1
      %p155 = por %p153, %p154
      %p157 = scmp.ne.s32.totalorder %s142, %s156
      %p158 = scmp.eq.s32.totalorder %s27, 0
      %p159 = por %p157, %p158
      %s161 = sadd.s32 %s160, 1
      %p164 = scmp.eq.s32.totalorder %s21, 1
      %p165 = scmp.ne.s32.totalorder %s160, %s162
      %p166 = scmp.eq.s32.totalorder %s21, 0
      %p167 = por %p165, %p166
      %p168 = scmp.ne.s32.totalorder %s160, %s162
      %p169 = scmp.eq.s32.totalorder %s26, 1
      %p170 = por %p168, %p169
      %p171 = scmp.ne.s32.totalorder %s162, %s163
      %p172 = scmp.eq.s32.totalorder %s26, 0
      %p173 = por %p171, %p172
      %p174 = scmp.ne.s32.totalorder %s162, %s163
      %p175 = scmp.eq.s32.totalorder %s27, 1
      %p176 = por %p174, %p175
      %p178 = scmp.ne.s32.totalorder %s163, %s177
      %p179 = scmp.eq.s32.totalorder %s27, 0
      %p180 = por %p178, %p179
      %s181 = ssub.s32 %s21, %s28
      %p182 = scmp.eq.s32.totalorder %s181, 0
      %s184 = sadd.s32 %s183, 1
      %s185 = scalar_select %p182, %s183, %s184
      %p188 = pneg %p182
      %p189 = scmp.eq.s32.totalorder %s21, 1
      %p190 = por %p188, %p189
      %p191 = scmp.ne.s32.totalorder %s183, %s186
      %p192 = scmp.eq.s32.totalorder %s21, 0
      %p193 = por %p191, %p192
      %p194 = scmp.ne.s32.totalorder %s183, %s186
      %p195 = scmp.eq.s32.totalorder %s26, 1
      %p196 = por %p194, %p195
      %p197 = scmp.ne.s32.totalorder %s186, %s187
      %p198 = scmp.eq.s32.totalorder %s26, 0
      %p199 = por %p197, %p198
      %p200 = scmp.ne.s32.totalorder %s186, %s187
      %p201 = scmp.eq.s32.totalorder %s27, 1
      %p202 = por %p200, %p201
      %p204 = scmp.ne.s32.totalorder %s187, %s203
      %p205 = scmp.eq.s32.totalorder %s27, 0
      %p206 = por %p204, %p205
      %p207 = scmp.le.s32.totalorder 1, %s21
      %p208 = scmp.lt.s32.totalorder %s21, 3
      %p209 = pnand %p207, %p208
      %p210 = pneg %p209
      // Predicated region
      $region9: #{tpu_custom_call.1} parent=5 // pred_check
        _
      $region10: #{tpu_custom_call.1} parent=5 // pred_check_branch
        %212 = sbr.rel (%p209) target = $region12
      $region11: #{tpu_custom_call.1} parent=5 // pred_region
        %s213 = ssub.s32 %s21, 1
        // Predicated region
        $region13: #{tpu_custom_call.1} parent=11 // pred_check
          %p214 = pneg %p68
        $region14: #{tpu_custom_call.1} parent=11 // pred_check_branch
          %216 = sbr.rel (%p214) target = $region16
        $region15: #{tpu_custom_call.1} parent=11 // pred_region
          %s218 = ssub.s32 1024, 1024
          %219 = vsyncadd [#allocation6], %s218
          %s220 = sshll.u32 [#allocation5], 4
          %s221 = int_to_ptr.vmem [resolvable:$true] %s220
          %226 = dma.hbm_to_vmem [thread:$0]  %s1, 1024, %s221, [#allocation6], 256, 256, 16
        $region16: #{tpu_custom_call.1} parent=11 // pred_fallthru
          _
        // Predicated region
        $region17: #{tpu_custom_call.1} parent=11 // pred_check
          %p227 = pneg %p89
        $region18: #{tpu_custom_call.1} parent=11 // pred_check_branch
          %229 = sbr.rel (%p227) target = $region20
        $region19: #{tpu_custom_call.1} parent=11 // pred_region
          %s231 = ssub.s32 64, 64
          %232 = vsyncadd [#allocation6], %s231
          %s234 = sshll.u32 [#allocation7], 4
          %s235 = int_to_ptr.vmem [resolvable:$true] %s234
          %237 = dma.hbm_to_vmem [thread:$0]  %s2, 64, %s235, [#allocation6]
        $region20: #{tpu_custom_call.1} parent=11 // pred_fallthru
          _
        // Predicated region
        $region21: #{tpu_custom_call.1} parent=11 // pred_check
          %p238 = pneg %p110
        $region22: #{tpu_custom_call.1} parent=11 // pred_check_branch
          %240 = sbr.rel (%p238) target = $region24
        $region23: #{tpu_custom_call.1} parent=11 // pred_region
          %s242 = ssub.s32 16384, 16384
          %243 = vsyncadd [#allocation9], %s242
          %s244 = sshll.u32 [#allocation8], 4
          %s245 = int_to_ptr.vmem [resolvable:$true] %s244
          %250 = dma.hbm_to_vmem [thread:$0]  %s3, 16384, %s245, [#allocation9], 256, 256, 16
        $region24: #{tpu_custom_call.1} parent=11 // pred_fallthru
          _
        // Predicated region
        $region25: #{tpu_custom_call.1} parent=11 // pred_check
          %p251 = pneg %p131
        $region26: #{tpu_custom_call.1} parent=11 // pred_check_branch
          %253 = sbr.rel (%p251) target = $region28
        $region27: #{tpu_custom_call.1} parent=11 // pred_region
          _
        $region28: #{tpu_custom_call.1} parent=11 // pred_fallthru
          _
        // Predicated region
        $region29: #{tpu_custom_call.1} parent=11 // pred_check
          %p254 = pneg %p152
        $region30: #{tpu_custom_call.1} parent=11 // pred_check_branch
          %256 = sbr.rel (%p254) target = $region32
        $region31: #{tpu_custom_call.1} parent=11 // pred_region
          %s258 = ssub.s32 4096, 4096
          %259 = vsyncadd [#allocation9], %s258
          %s260 = sshll.u32 [#allocation10], 4
          %s261 = int_to_ptr.vmem [resolvable:$true] %s260
          %266 = dma.hbm_to_vmem [thread:$0]  %s5, 4096, %s261, [#allocation9], 64, 64, 4
        $region32: #{tpu_custom_call.1} parent=11 // pred_fallthru
          _
        // Predicated region
        $region33: #{tpu_custom_call.1} parent=11 // pred_check
          %p267 = pneg %p173
        $region34: #{tpu_custom_call.1} parent=11 // pred_check_branch
          %269 = sbr.rel (%p267) target = $region36
        $region35: #{tpu_custom_call.1} parent=11 // pred_region
          _
        $region36: #{tpu_custom_call.1} parent=11 // pred_fallthru
          _
      $region12: #{tpu_custom_call.1} parent=5 // pred_fallthru
        _
      %p270 = scmp.lt.s32.totalorder %s21, 2
      // Predicated region
      $region37: #{tpu_custom_call.1} parent=5 // pred_check
        %p271 = pneg %p270
      $region38: #{tpu_custom_call.1} parent=5 // pred_check_branch
        %273 = sbr.rel (%p271) target = $region40
      $region39: #{tpu_custom_call.1} parent=5 // pred_region
        // Predicated region
        $region41: #{tpu_custom_call.1} parent=39 // pred_check
          %p274 = pneg %p41
        $region42: #{tpu_custom_call.1} parent=39 // pred_check_branch
          %276 = sbr.rel (%p274) target = $region44
        $region43: #{tpu_custom_call.1} parent=39 // pred_region
          %s277 = sand.u32 %s31, 1
          %s278 = scalar_lea.sflag [#allocation3], %s277
          %s279 = sand.u32 %s31, 1
          %s280 = smul.addr %s279, 8
          %s281 = scalar_lea.vmem [#allocation2], %s280
          %s283 = ssub.s32 128, 128
          %284 = vsyncadd %s278, %s283
          %s285 = smul.addr %s21, 128
          %s286 = scalar_lea.hbm %s0, %s285
          %s288 = sshll.u32 %s281, 4
          %s289 = int_to_ptr.vmem [resolvable:$true] %s288
          %291 = dma.hbm_to_vmem [thread:$0]  %s286, 128, %s289, %s278
        $region44: #{tpu_custom_call.1} parent=39 // pred_fallthru
          _
      $region40: #{tpu_custom_call.1} parent=5 // pred_fallthru
        _
      %p292 = scmp.le.s32.totalorder 1, %s21
      %p293 = scmp.lt.s32.totalorder %s21, 3
      %p294 = pnand %p292, %p293
      %p295 = pneg %p294
      // Predicated region
      $region45: #{tpu_custom_call.1} parent=5 // pred_check
        _
      $region46: #{tpu_custom_call.1} parent=5 // pred_check_branch
        %297 = sbr.rel (%p294) target = $region48
      $region47: #{tpu_custom_call.1} parent=5 // pred_region
        %s298 = ssub.s32 %s21, 1
        %s299 = sand.u32 %s34, 1
        %s300 = scalar_lea.sflag [#allocation3], %s299
        %s301 = sand.u32 %s34, 1
        %s302 = smul.addr %s301, 8
        %s303 = scalar_lea.vmem [#allocation2], %s302
        // Predicated region
        $region49: #{tpu_custom_call.1} parent=47 // pred_check
          %p304 = pneg %p47
        $region50: #{tpu_custom_call.1} parent=47 // pred_check_branch
          %306 = sbr.rel (%p304) target = $region52
        $region51: #{tpu_custom_call.1} parent=47 // pred_region
          %307 = dma.done %s300, 128
        $region52: #{tpu_custom_call.1} parent=47 // pred_fallthru
          _
        // Predicated region
        $region53: #{tpu_custom_call.1} parent=47 // pred_check
          %p308 = pneg %p68
        $region54: #{tpu_custom_call.1} parent=47 // pred_check_branch
          %310 = sbr.rel (%p308) target = $region56
        $region55: #{tpu_custom_call.1} parent=47 // pred_region
          %311 = dma.done [#allocation6], 1024
        $region56: #{tpu_custom_call.1} parent=47 // pred_fallthru
          _
        // Predicated region
        $region57: #{tpu_custom_call.1} parent=47 // pred_check
          %p312 = pneg %p89
        $region58: #{tpu_custom_call.1} parent=47 // pred_check_branch
          %314 = sbr.rel (%p312) target = $region60
        $region59: #{tpu_custom_call.1} parent=47 // pred_region
          %315 = dma.done [#allocation6], 64
        $region60: #{tpu_custom_call.1} parent=47 // pred_fallthru
          _
        // Predicated region
        $region61: #{tpu_custom_call.1} parent=47 // pred_check
          %p316 = pneg %p110
        $region62: #{tpu_custom_call.1} parent=47 // pred_check_branch
          %318 = sbr.rel (%p316) target = $region64
        $region63: #{tpu_custom_call.1} parent=47 // pred_region
          %319 = dma.done [#allocation9], 16384
        $region64: #{tpu_custom_call.1} parent=47 // pred_fallthru
          _
        // Predicated region
        $region65: #{tpu_custom_call.1} parent=47 // pred_check
          %p320 = pneg %p152
        $region66: #{tpu_custom_call.1} parent=47 // pred_check_branch
          %322 = sbr.rel (%p320) target = $region68
        $region67: #{tpu_custom_call.1} parent=47 // pred_region
          %323 = dma.done [#allocation9], 4096
        $region68: #{tpu_custom_call.1} parent=47 // pred_fallthru
          _
        %s324 = sand.u32 %s34, 1
        %s325 = scalar_lea.sflag [#allocation3], %s324
        %s326 = sand.u32 %s34, 1
        %s327 = smul.addr %s326, 8
        %s328 = scalar_lea.vmem [#allocation2], %s327
        %p329 = pneg %p47
        %p330 = pneg %p44
        %p331 = pneg %p68
        %p332 = pneg %p65
        %p333 = pneg %p89
        %p334 = pneg %p86
        %p335 = pneg %p110
        %p336 = pneg %p107
        %p337 = pneg %p131
        %p338 = pneg %p128
        %p339 = pneg %p152
        %p340 = pneg %p149
        %p341 = pneg %p173
        %p342 = pneg %p170
        %p343 = pneg %p199
        %p344 = pneg %p196
        %s345 = sand.u32 %s186, 1
        %s346 = scalar_lea.sflag [#allocation4], %s345
        %s347 = sand.u32 %s186, 1
        %s348 = smul.addr %s347, 8
        %s349 = scalar_lea.vmem [#allocation11], %s348
        %v351 = vld [vmem:[%s303] sm:$0xff]
        %v352 = vpack.c.bf16 %v351, %v351
        %v353 = vld [vmem:[#allocation5] sm:$0xff]
        %v354 = vld [vmem:[#allocation5 + $0x8] sm:$0xff]
        %v355 = vld [vmem:[#allocation5 + $0x10] sm:$0xff]
        %v356 = vld [vmem:[#allocation5 + $0x18] sm:$0xff]
        %v357 = vld [vmem:[#allocation5 + $0x20] sm:$0xff]
        %v358 = vld [vmem:[#allocation5 + $0x28] sm:$0xff]
        %v359 = vld [vmem:[#allocation5 + $0x30] sm:$0xff]
        %v360 = vld [vmem:[#allocation5 + $0x38] sm:$0xff]
        %v361 = vld [vmem:[#allocation7] sm:$0xf]
        %v363 = vlaneseq
        %v364 = vshrl.u32 %v363, 7
        %v365 = vsub.s32 0, %v364
        %v366 = vrot.slane %v361, %v365
        %v367 = vlaneseq
        %v368 = vshrl.u32 %v367, 7
        %v369 = vsub.s32 1, %v368
        %v370 = vrot.slane %v361, %v369
        %v371 = vlaneseq
        %v372 = vshrl.u32 %v371, 7
        %v373 = vsub.s32 2, %v372
        %v374 = vrot.slane %v361, %v373
        %v375 = vlaneseq
        %v376 = vshrl.u32 %v375, 7
        %v377 = vsub.s32 3, %v376
        %v378 = vrot.slane %v361, %v377
        %v391 = vunpack.c.l.b16 %v353
        %v392 = vunpack.c.h.b16 %v353
        %v393 = vunpack.c.l.b16 %v354
        %v394 = vunpack.c.h.b16 %v354
        %v395 = vunpack.c.l.b16 %v355
        %v396 = vunpack.c.h.b16 %v355
        %v397 = vunpack.c.l.b16 %v356
        %v398 = vunpack.c.h.b16 %v356
        %v399 = vunpack.c.l.b16 %v357
        %v400 = vunpack.c.h.b16 %v357
        %v401 = vunpack.c.l.b16 %v358
        %v402 = vunpack.c.h.b16 %v358
        %v403 = vunpack.c.l.b16 %v359
        %v404 = vunpack.c.h.b16 %v359
        %v405 = vunpack.c.l.b16 %v360
        %v406 = vunpack.c.h.b16 %v360
        %v407 = vpack.c.b16 %v395, %v391
        %v408 = vpack.c.b16 %v396, %v392
        %v409 = vpack.c.b16 %v397, %v393
        %v410 = vpack.c.b16 %v398, %v394
        %v411 = vpack.c.b16 %v403, %v399
        %v412 = vpack.c.b16 %v404, %v400
        %v413 = vpack.c.b16 %v405, %v401
        %v414 = vpack.c.b16 %v406, %v402
        %vm423 = vcmask 261120
        %v425 = vsel %vm423, %v352, 0
        %427 = vmatprep.subr.bf16.mxu0 0
        %428 = vmatpush1.bf16.msra.mxu0 0
        %429 = vmatprep.subr.bf16.mxu0 0
        %430 = vmatpush1.bf16.msra.mxu0 0
        %431 = vmatprep.subr.bf16.mxu0 0
        %432 = vmatpush1.bf16.msra.mxu0 0
        %433 = vmatprep.subr.bf16.mxu0 0
        %434 = vmatpush1.bf16.msra.mxu0 0
        %435 = vmatprep.subr.bf16.mxu0 0
        %436 = vmatpush1.bf16.msra.mxu0 0
        %437 = vmatprep.subr.bf16.mxu0 0
        %438 = vmatpush1.bf16.msra.mxu0 0
        %439 = vmatprep.subr.bf16.mxu0 %v412
        %440 = vmatpush1.bf16.msra.mxu0 %v411
        %441 = vmatprep.subr.bf16.mxu0 %v408
        %442 = vmatpush1.bf16.msra.mxu0 %v407
        %443 = vmatprep.subr.bf16.mxu0 0
        %444 = vmatpush2.bf16.msra.mxu0 0
        %445 = vmatprep.subr.bf16.mxu0 0
        %446 = vmatpush2.bf16.msra.mxu0 0
        %447 = vmatprep.subr.bf16.mxu0 0
        %448 = vmatpush2.bf16.msra.mxu0 0
        %449 = vmatprep.subr.bf16.mxu0 0
        %450 = vmatpush2.bf16.msra.mxu0 0
        %451 = vmatprep.subr.bf16.mxu0 0
        %452 = vmatpush2.bf16.msra.mxu0 0
        %453 = vmatprep.subr.bf16.mxu0 0
        %454 = vmatpush2.bf16.msra.mxu0 0
        %455 = vmatprep.subr.bf16.mxu0 0
        %456 = vmatpush2.bf16.msra.mxu0 0
        %457 = vmatprep.subr.bf16.mxu0 0
        %458 = vmatpush2.bf16.msra.mxu0 0
        %459 = vmatprep.mubr.bf16.mxu0 0
        %460 = vmatmul.mubr.bf16.gmra.mxu0 %v425
        %v461 = vpop.f32.mrf.mxu0
        %v462 = vadd.f32 %v366, %v461
        %v463 = vpop.f32.mrf.mxu0
        %v464 = vadd.f32 %v370, %v463
        %v465 = vpop.f32.mrf.mxu0
        %v466 = vpop.f32.mrf.mxu0
        %467 = vdwg.mxu0
        %468 = vmatprep.subr.bf16.mxu0 0
        %469 = vmatpush1.bf16.msra.mxu0 0
        %470 = vmatprep.subr.bf16.mxu0 0
        %471 = vmatpush1.bf16.msra.mxu0 0
        %472 = vmatprep.subr.bf16.mxu0 0
        %473 = vmatpush1.bf16.msra.mxu0 0
        %474 = vmatprep.subr.bf16.mxu0 0
        %475 = vmatpush1.bf16.msra.mxu0 0
        %476 = vmatprep.subr.bf16.mxu0 0
        %477 = vmatpush1.bf16.msra.mxu0 0
        %478 = vmatprep.subr.bf16.mxu0 0
        %479 = vmatpush1.bf16.msra.mxu0 0
        %480 = vmatprep.subr.bf16.mxu0 %v414
        %481 = vmatpush1.bf16.msra.mxu0 %v413
        %482 = vmatprep.subr.bf16.mxu0 %v410
        %483 = vmatpush1.bf16.msra.mxu0 %v409
        %484 = vmatprep.subr.bf16.mxu0 0
        %485 = vmatpush2.bf16.msra.mxu0 0
        %486 = vmatprep.subr.bf16.mxu0 0
        %487 = vmatpush2.bf16.msra.mxu0 0
        %488 = vmatprep.subr.bf16.mxu0 0
        %489 = vmatpush2.bf16.msra.mxu0 0
        %490 = vmatprep.subr.bf16.mxu0 0
        %491 = vmatpush2.bf16.msra.mxu0 0
        %492 = vmatprep.subr.bf16.mxu0 0
        %493 = vmatpush2.bf16.msra.mxu0 0
        %494 = vmatprep.subr.bf16.mxu0 0
        %495 = vmatpush2.bf16.msra.mxu0 0
        %496 = vmatprep.subr.bf16.mxu0 0
        %497 = vmatpush2.bf16.msra.mxu0 0
        %498 = vmatprep.subr.bf16.mxu0 0
        %499 = vmatpush2.bf16.msra.mxu0 0
        %500 = vmatprep.mubr.bf16.mxu0 0
        %501 = vmatmul.mubr.bf16.gmra.mxu0 %v425
        %v502 = vpop.f32.mrf.mxu0
        %v503 = vadd.f32 %v374, %v502
        %v504 = vpop.f32.mrf.mxu0
        %v505 = vadd.f32 %v378, %v504
        %v506 = vpop.f32.mrf.mxu0
        %v507 = vpop.f32.mrf.mxu0
        %508 = vdwg.mxu0
        %v509 = vmax.f32 %v462, 0.0
        %v510 = vmax.f32 %v464, 0.0
        %v511 = vmax.f32 %v503, 0.0
        %v512 = vmax.f32 %v505, 0.0
        %v513 = vpack.c.bf16 %v509, %v509
        %v514 = vpack.c.bf16 %v510, %v510
        %v515 = vpack.c.bf16 %v511, %v511
        %v516 = vpack.c.bf16 %v512, %v512
        %v517 = vld [vmem:[#allocation8] sm:$0xff]
        %v518 = vld [vmem:[#allocation8 + $0x8] sm:$0xff]
        %v519 = vld [vmem:[#allocation8 + $0x10] sm:$0xff]
        %v520 = vld [vmem:[#allocation8 + $0x18] sm:$0xff]
        %v521 = vld [vmem:[#allocation8 + $0x20] sm:$0xff]
        %v522 = vld [vmem:[#allocation8 + $0x28] sm:$0xff]
        %v523 = vld [vmem:[#allocation8 + $0x30] sm:$0xff]
        %v524 = vld [vmem:[#allocation8 + $0x38] sm:$0xff]
        %v525 = vld [vmem:[#allocation8 + $0x40] sm:$0xff]
        %v526 = vld [vmem:[#allocation8 + $0x48] sm:$0xff]
        %v527 = vld [vmem:[#allocation8 + $0x50] sm:$0xff]
        %v528 = vld [vmem:[#allocation8 + $0x58] sm:$0xff]
        %v529 = vld [vmem:[#allocation8 + $0x60] sm:$0xff]
        %v530 = vld [vmem:[#allocation8 + $0x68] sm:$0xff]
        %v531 = vld [vmem:[#allocation8 + $0x70] sm:$0xff]
        %v532 = vld [vmem:[#allocation8 + $0x78] sm:$0xff]
        %v533 = vld [vmem:[#allocation8 + $0x80] sm:$0xff]
        %v534 = vld [vmem:[#allocation8 + $0x88] sm:$0xff]
        %v535 = vld [vmem:[#allocation8 + $0x90] sm:$0xff]
        %v536 = vld [vmem:[#allocation8 + $0x98] sm:$0xff]
        %v537 = vld [vmem:[#allocation8 + $0xa0] sm:$0xff]
        %v538 = vld [vmem:[#allocation8 + $0xa8] sm:$0xff]
        %v539 = vld [vmem:[#allocation8 + $0xb0] sm:$0xff]
        %v540 = vld [vmem:[#allocation8 + $0xb8] sm:$0xff]
        %v541 = vld [vmem:[#allocation8 + $0xc0] sm:$0xff]
        %v542 = vld [vmem:[#allocation8 + $0xc8] sm:$0xff]
        %v543 = vld [vmem:[#allocation8 + $0xd0] sm:$0xff]
        %v544 = vld [vmem:[#allocation8 + $0xd8] sm:$0xff]
        %v545 = vld [vmem:[#allocation8 + $0xe0] sm:$0xff]
        %v546 = vld [vmem:[#allocation8 + $0xe8] sm:$0xff]
        %v547 = vld [vmem:[#allocation8 + $0xf0] sm:$0xff]
        %v548 = vld [vmem:[#allocation8 + $0xf8] sm:$0xff]
        %v549 = vld [vmem:[#allocation8 + $0x100] sm:$0xff]
        %v550 = vld [vmem:[#allocation8 + $0x108] sm:$0xff]
        %v551 = vld [vmem:[#allocation8 + $0x110] sm:$0xff]
        %v552 = vld [vmem:[#allocation8 + $0x118] sm:$0xff]
        %v553 = vld [vmem:[#allocation8 + $0x120] sm:$0xff]
        %v554 = vld [vmem:[#allocation8 + $0x128] sm:$0xff]
        %v555 = vld [vmem:[#allocation8 + $0x130] sm:$0xff]
        %v556 = vld [vmem:[#allocation8 + $0x138] sm:$0xff]
        %v557 = vld [vmem:[#allocation8 + $0x140] sm:$0xff]
        %v558 = vld [vmem:[#allocation8 + $0x148] sm:$0xff]
        %v559 = vld [vmem:[#allocation8 + $0x150] sm:$0xff]
        %v560 = vld [vmem:[#allocation8 + $0x158] sm:$0xff]
        %v561 = vld [vmem:[#allocation8 + $0x160] sm:$0xff]
        %v562 = vld [vmem:[#allocation8 + $0x168] sm:$0xff]
        %v563 = vld [vmem:[#allocation8 + $0x170] sm:$0xff]
        %v564 = vld [vmem:[#allocation8 + $0x178] sm:$0xff]
        %v565 = vld [vmem:[#allocation8 + $0x180] sm:$0xff]
        %v566 = vld [vmem:[#allocation8 + $0x188] sm:$0xff]
        %v567 = vld [vmem:[#allocation8 + $0x190] sm:$0xff]
        %v568 = vld [vmem:[#allocation8 + $0x198] sm:$0xff]
        %v569 = vld [vmem:[#allocation8 + $0x1a0] sm:$0xff]
        %v570 = vld [vmem:[#allocation8 + $0x1a8] sm:$0xff]
        %v571 = vld [vmem:[#allocation8 + $0x1b0] sm:$0xff]
        %v572 = vld [vmem:[#allocation8 + $0x1b8] sm:$0xff]
        %v573 = vld [vmem:[#allocation8 + $0x1c0] sm:$0xff]
        %v574 = vld [vmem:[#allocation8 + $0x1c8] sm:$0xff]
        %v575 = vld [vmem:[#allocation8 + $0x1d0] sm:$0xff]
        %v576 = vld [vmem:[#allocation8 + $0x1d8] sm:$0xff]
        %v577 = vld [vmem:[#allocation8 + $0x1e0] sm:$0xff]
        %v578 = vld [vmem:[#allocation8 + $0x1e8] sm:$0xff]
        %v579 = vld [vmem:[#allocation8 + $0x1f0] sm:$0xff]
        %v580 = vld [vmem:[#allocation8 + $0x1f8] sm:$0xff]
        %v581 = vld [vmem:[#allocation8 + $0x200] sm:$0xff]
        %v582 = vld [vmem:[#allocation8 + $0x208] sm:$0xff]
        %v583 = vld [vmem:[#allocation8 + $0x210] sm:$0xff]
        %v584 = vld [vmem:[#allocation8 + $0x218] sm:$0xff]
        %v585 = vld [vmem:[#allocation8 + $0x220] sm:$0xff]
        %v586 = vld [vmem:[#allocation8 + $0x228] sm:$0xff]
        %v587 = vld [vmem:[#allocation8 + $0x230] sm:$0xff]
        %v588 = vld [vmem:[#allocation8 + $0x238] sm:$0xff]
        %v589 = vld [vmem:[#allocation8 + $0x240] sm:$0xff]
        %v590 = vld [vmem:[#allocation8 + $0x248] sm:$0xff]
        %v591 = vld [vmem:[#allocation8 + $0x250] sm:$0xff]
        %v592 = vld [vmem:[#allocation8 + $0x258] sm:$0xff]
        %v593 = vld [vmem:[#allocation8 + $0x260] sm:$0xff]
        %v594 = vld [vmem:[#allocation8 + $0x268] sm:$0xff]
        %v595 = vld [vmem:[#allocation8 + $0x270] sm:$0xff]
        %v596 = vld [vmem:[#allocation8 + $0x278] sm:$0xff]
        %v597 = vld [vmem:[#allocation8 + $0x280] sm:$0xff]
        %v598 = vld [vmem:[#allocation8 + $0x288] sm:$0xff]
        %v599 = vld [vmem:[#allocation8 + $0x290] sm:$0xff]
        %v600 = vld [vmem:[#allocation8 + $0x298] sm:$0xff]
        %v601 = vld [vmem:[#allocation8 + $0x2a0] sm:$0xff]
        %v602 = vld [vmem:[#allocation8 + $0x2a8] sm:$0xff]
        %v603 = vld [vmem:[#allocation8 + $0x2b0] sm:$0xff]
        %v604 = vld [vmem:[#allocation8 + $0x2b8] sm:$0xff]
        %v605 = vld [vmem:[#allocation8 + $0x2c0] sm:$0xff]
        %v606 = vld [vmem:[#allocation8 + $0x2c8] sm:$0xff]
        %v607 = vld [vmem:[#allocation8 + $0x2d0] sm:$0xff]
        %v608 = vld [vmem:[#allocation8 + $0x2d8] sm:$0xff]
        %v609 = vld [vmem:[#allocation8 + $0x2e0] sm:$0xff]
        %v610 = vld [vmem:[#allocation8 + $0x2e8] sm:$0xff]
        %v611 = vld [vmem:[#allocation8 + $0x2f0] sm:$0xff]
        %v612 = vld [vmem:[#allocation8 + $0x2f8] sm:$0xff]
        %v613 = vld [vmem:[#allocation8 + $0x300] sm:$0xff]
        %v614 = vld [vmem:[#allocation8 + $0x308] sm:$0xff]
        %v615 = vld [vmem:[#allocation8 + $0x310] sm:$0xff]
        %v616 = vld [vmem:[#allocation8 + $0x318] sm:$0xff]
        %v617 = vld [vmem:[#allocation8 + $0x320] sm:$0xff]
        %v618 = vld [vmem:[#allocation8 + $0x328] sm:$0xff]
        %v619 = vld [vmem:[#allocation8 + $0x330] sm:$0xff]
        %v620 = vld [vmem:[#allocation8 + $0x338] sm:$0xff]
        %v621 = vld [vmem:[#allocation8 + $0x340] sm:$0xff]
        %v622 = vld [vmem:[#allocation8 + $0x348] sm:$0xff]
        %v623 = vld [vmem:[#allocation8 + $0x350] sm:$0xff]
        %v624 = vld [vmem:[#allocation8 + $0x358] sm:$0xff]
        %v625 = vld [vmem:[#allocation8 + $0x360] sm:$0xff]
        %v626 = vld [vmem:[#allocation8 + $0x368] sm:$0xff]
        %v627 = vld [vmem:[#allocation8 + $0x370] sm:$0xff]
        %v628 = vld [vmem:[#allocation8 + $0x378] sm:$0xff]
        %v629 = vld [vmem:[#allocation8 + $0x380] sm:$0xff]
        %v630 = vld [vmem:[#allocation8 + $0x388] sm:$0xff]
        %v631 = vld [vmem:[#allocation8 + $0x390] sm:$0xff]
        %v632 = vld [vmem:[#allocation8 + $0x398] sm:$0xff]
        %v633 = vld [vmem:[#allocation8 + $0x3a0] sm:$0xff]
        %v634 = vld [vmem:[#allocation8 + $0x3a8] sm:$0xff]
        %v635 = vld [vmem:[#allocation8 + $0x3b0] sm:$0xff]
        %v636 = vld [vmem:[#allocation8 + $0x3b8] sm:$0xff]
        %v637 = vld [vmem:[#allocation8 + $0x3c0] sm:$0xff]
        %v638 = vld [vmem:[#allocation8 + $0x3c8] sm:$0xff]
        %v639 = vld [vmem:[#allocation8 + $0x3d0] sm:$0xff]
        %v640 = vld [vmem:[#allocation8 + $0x3d8] sm:$0xff]
        %v641 = vld [vmem:[#allocation8 + $0x3e0] sm:$0xff]
        %v642 = vld [vmem:[#allocation8 + $0x3e8] sm:$0xff]
        %v643 = vld [vmem:[#allocation8 + $0x3f0] sm:$0xff]
        %v644 = vld [vmem:[#allocation8 + $0x3f8] sm:$0xff]
        %v645 = vld [vmem:[%s4] sm:$0xf]
        %v647 = vlaneseq
        %v648 = vshrl.u32 %v647, 7
        %v649 = vsub.s32 0, %v648
        %v650 = vrot.slane %v645, %v649
        %v651 = vlaneseq
        %v652 = vshrl.u32 %v651, 7
        %v653 = vsub.s32 1, %v652
        %v654 = vrot.slane %v645, %v653
        %v655 = vlaneseq
        %v656 = vshrl.u32 %v655, 7
        %v657 = vsub.s32 2, %v656
        %v658 = vrot.slane %v645, %v657
        %v659 = vlaneseq
        %v660 = vshrl.u32 %v659, 7
        %v661 = vsub.s32 3, %v660
        %v662 = vrot.slane %v645, %v661
        %v795 = vunpack.c.l.b16 %v517
        %v796 = vunpack.c.h.b16 %v517
        %v797 = vunpack.c.l.b16 %v518
        %v798 = vunpack.c.h.b16 %v518
        %v799 = vunpack.c.l.b16 %v519
        %v800 = vunpack.c.h.b16 %v519
        %v801 = vunpack.c.l.b16 %v520
        %v802 = vunpack.c.h.b16 %v520
        %v803 = vunpack.c.l.b16 %v521
        %v804 = vunpack.c.h.b16 %v521
        %v805 = vunpack.c.l.b16 %v522
        %v806 = vunpack.c.h.b16 %v522
        %v807 = vunpack.c.l.b16 %v523
        %v808 = vunpack.c.h.b16 %v523
        %v809 = vunpack.c.l.b16 %v524
        %v810 = vunpack.c.h.b16 %v524
        %v811 = vunpack.c.l.b16 %v525
        %v812 = vunpack.c.h.b16 %v525
        %v813 = vunpack.c.l.b16 %v526
        %v814 = vunpack.c.h.b16 %v526
        %v815 = vunpack.c.l.b16 %v527
        %v816 = vunpack.c.h.b16 %v527
        %v817 = vunpack.c.l.b16 %v528
        %v818 = vunpack.c.h.b16 %v528
        %v819 = vunpack.c.l.b16 %v529
        %v820 = vunpack.c.h.b16 %v529
        %v821 = vunpack.c.l.b16 %v530
        %v822 = vunpack.c.h.b16 %v530
        %v823 = vunpack.c.l.b16 %v531
        %v824 = vunpack.c.h.b16 %v531
        %v825 = vunpack.c.l.b16 %v532
        %v826 = vunpack.c.h.b16 %v532
        %v827 = vunpack.c.l.b16 %v533
        %v828 = vunpack.c.h.b16 %v533
        %v829 = vunpack.c.l.b16 %v534
        %v830 = vunpack.c.h.b16 %v534
        %v831 = vunpack.c.l.b16 %v535
        %v832 = vunpack.c.h.b16 %v535
        %v833 = vunpack.c.l.b16 %v536
        %v834 = vunpack.c.h.b16 %v536
        %v835 = vunpack.c.l.b16 %v537
        %v836 = vunpack.c.h.b16 %v537
        %v837 = vunpack.c.l.b16 %v538
        %v838 = vunpack.c.h.b16 %v538
        %v839 = vunpack.c.l.b16 %v539
        %v840 = vunpack.c.h.b16 %v539
        %v841 = vunpack.c.l.b16 %v540
        %v842 = vunpack.c.h.b16 %v540
        %v843 = vunpack.c.l.b16 %v541
        %v844 = vunpack.c.h.b16 %v541
        %v845 = vunpack.c.l.b16 %v542
        %v846 = vunpack.c.h.b16 %v542
        %v847 = vunpack.c.l.b16 %v543
        %v848 = vunpack.c.h.b16 %v543
        %v849 = vunpack.c.l.b16 %v544
        %v850 = vunpack.c.h.b16 %v544
        %v851 = vunpack.c.l.b16 %v545
        %v852 = vunpack.c.h.b16 %v545
        %v853 = vunpack.c.l.b16 %v546
        %v854 = vunpack.c.h.b16 %v546
        %v855 = vunpack.c.l.b16 %v547
        %v856 = vunpack.c.h.b16 %v547
        %v857 = vunpack.c.l.b16 %v548
        %v858 = vunpack.c.h.b16 %v548
        %v859 = vunpack.c.l.b16 %v549
        %v860 = vunpack.c.h.b16 %v549
        %v861 = vunpack.c.l.b16 %v550
        %v862 = vunpack.c.h.b16 %v550
        %v863 = vunpack.c.l.b16 %v551
        %v864 = vunpack.c.h.b16 %v551
        %v865 = vunpack.c.l.b16 %v552
        %v866 = vunpack.c.h.b16 %v552
        %v867 = vunpack.c.l.b16 %v553
        %v868 = vunpack.c.h.b16 %v553
        %v869 = vunpack.c.l.b16 %v554
        %v870 = vunpack.c.h.b16 %v554
        %v871 = vunpack.c.l.b16 %v555
        %v872 = vunpack.c.h.b16 %v555
        %v873 = vunpack.c.l.b16 %v556
        %v874 = vunpack.c.h.b16 %v556
        %v875 = vunpack.c.l.b16 %v557
        %v876 = vunpack.c.h.b16 %v557
        %v877 = vunpack.c.l.b16 %v558
        %v878 = vunpack.c.h.b16 %v558
        %v879 = vunpack.c.l.b16 %v559
        %v880 = vunpack.c.h.b16 %v559
        %v881 = vunpack.c.l.b16 %v560
        %v882 = vunpack.c.h.b16 %v560
        %v883 = vunpack.c.l.b16 %v561
        %v884 = vunpack.c.h.b16 %v561
        %v885 = vunpack.c.l.b16 %v562
        %v886 = vunpack.c.h.b16 %v562
        %v887 = vunpack.c.l.b16 %v563
        %v888 = vunpack.c.h.b16 %v563
        %v889 = vunpack.c.l.b16 %v564
        %v890 = vunpack.c.h.b16 %v564
        %v891 = vunpack.c.l.b16 %v565
        %v892 = vunpack.c.h.b16 %v565
        %v893 = vunpack.c.l.b16 %v566
        %v894 = vunpack.c.h.b16 %v566
        %v895 = vunpack.c.l.b16 %v567
        %v896 = vunpack.c.h.b16 %v567
        %v897 = vunpack.c.l.b16 %v568
        %v898 = vunpack.c.h.b16 %v568
        %v899 = vunpack.c.l.b16 %v569
        %v900 = vunpack.c.h.b16 %v569
        %v901 = vunpack.c.l.b16 %v570
        %v902 = vunpack.c.h.b16 %v570
        %v903 = vunpack.c.l.b16 %v571
        %v904 = vunpack.c.h.b16 %v571
        %v905 = vunpack.c.l.b16 %v572
        %v906 = vunpack.c.h.b16 %v572
        %v907 = vunpack.c.l.b16 %v573
        %v908 = vunpack.c.h.b16 %v573
        %v909 = vunpack.c.l.b16 %v574
        %v910 = vunpack.c.h.b16 %v574
        %v911 = vunpack.c.l.b16 %v575
        %v912 = vunpack.c.h.b16 %v575
        %v913 = vunpack.c.l.b16 %v576
        %v914 = vunpack.c.h.b16 %v576
        %v915 = vunpack.c.l.b16 %v577
        %v916 = vunpack.c.h.b16 %v577
        %v917 = vunpack.c.l.b16 %v578
        %v918 = vunpack.c.h.b16 %v578
        %v919 = vunpack.c.l.b16 %v579
        %v920 = vunpack.c.h.b16 %v579
        %v921 = vunpack.c.l.b16 %v580
        %v922 = vunpack.c.h.b16 %v580
        %v923 = vunpack.c.l.b16 %v581
        %v924 = vunpack.c.h.b16 %v581
        %v925 = vunpack.c.l.b16 %v582
        %v926 = vunpack.c.h.b16 %v582
        %v927 = vunpack.c.l.b16 %v583
        %v928 = vunpack.c.h.b16 %v583
        %v929 = vunpack.c.l.b16 %v584
        %v930 = vunpack.c.h.b16 %v584
        %v931 = vunpack.c.l.b16 %v585
        %v932 = vunpack.c.h.b16 %v585
        %v933 = vunpack.c.l.b16 %v586
        %v934 = vunpack.c.h.b16 %v586
        %v935 = vunpack.c.l.b16 %v587
        %v936 = vunpack.c.h.b16 %v587
        %v937 = vunpack.c.l.b16 %v588
        %v938 = vunpack.c.h.b16 %v588
        %v939 = vunpack.c.l.b16 %v589
        %v940 = vunpack.c.h.b16 %v589
        %v941 = vunpack.c.l.b16 %v590
        %v942 = vunpack.c.h.b16 %v590
        %v943 = vunpack.c.l.b16 %v591
        %v944 = vunpack.c.h.b16 %v591
        %v945 = vunpack.c.l.b16 %v592
        %v946 = vunpack.c.h.b16 %v592
        %v947 = vunpack.c.l.b16 %v593
        %v948 = vunpack.c.h.b16 %v593
        %v949 = vunpack.c.l.b16 %v594
        %v950 = vunpack.c.h.b16 %v594
        %v951 = vunpack.c.l.b16 %v595
        %v952 = vunpack.c.h.b16 %v595
        %v953 = vunpack.c.l.b16 %v596
        %v954 = vunpack.c.h.b16 %v596
        %v955 = vunpack.c.l.b16 %v597
        %v956 = vunpack.c.h.b16 %v597
        %v957 = vunpack.c.l.b16 %v598
        %v958 = vunpack.c.h.b16 %v598
        %v959 = vunpack.c.l.b16 %v599
        %v960 = vunpack.c.h.b16 %v599
        %v961 = vunpack.c.l.b16 %v600
        %v962 = vunpack.c.h.b16 %v600
        %v963 = vunpack.c.l.b16 %v601
        %v964 = vunpack.c.h.b16 %v601
        %v965 = vunpack.c.l.b16 %v602
        %v966 = vunpack.c.h.b16 %v602
        %v967 = vunpack.c.l.b16 %v603
        %v968 = vunpack.c.h.b16 %v603
        %v969 = vunpack.c.l.b16 %v604
        %v970 = vunpack.c.h.b16 %v604
        %v971 = vunpack.c.l.b16 %v605
        %v972 = vunpack.c.h.b16 %v605
        %v973 = vunpack.c.l.b16 %v606
        %v974 = vunpack.c.h.b16 %v606
        %v975 = vunpack.c.l.b16 %v607
        %v976 = vunpack.c.h.b16 %v607
        %v977 = vunpack.c.l.b16 %v608
        %v978 = vunpack.c.h.b16 %v608
        %v979 = vunpack.c.l.b16 %v609
        %v980 = vunpack.c.h.b16 %v609
        %v981 = vunpack.c.l.b16 %v610
        %v982 = vunpack.c.h.b16 %v610
        %v983 = vunpack.c.l.b16 %v611
        %v984 = vunpack.c.h.b16 %v611
        %v985 = vunpack.c.l.b16 %v612
        %v986 = vunpack.c.h.b16 %v612
        %v987 = vunpack.c.l.b16 %v613
        %v988 = vunpack.c.h.b16 %v613
        %v989 = vunpack.c.l.b16 %v614
        %v990 = vunpack.c.h.b16 %v614
        %v991 = vunpack.c.l.b16 %v615
        %v992 = vunpack.c.h.b16 %v615
        %v993 = vunpack.c.l.b16 %v616
        %v994 = vunpack.c.h.b16 %v616
        %v995 = vunpack.c.l.b16 %v617
        %v996 = vunpack.c.h.b16 %v617
        %v997 = vunpack.c.l.b16 %v618
        %v998 = vunpack.c.h.b16 %v618
        %v999 = vunpack.c.l.b16 %v619
        %v1000 = vunpack.c.h.b16 %v619
        %v1001 = vunpack.c.l.b16 %v620
        %v1002 = vunpack.c.h.b16 %v620
        %v1003 = vunpack.c.l.b16 %v621
        %v1004 = vunpack.c.h.b16 %v621
        %v1005 = vunpack.c.l.b16 %v622
        %v1006 = vunpack.c.h.b16 %v622
        %v1007 = vunpack.c.l.b16 %v623
        %v1008 = vunpack.c.h.b16 %v623
        %v1009 = vunpack.c.l.b16 %v624
        %v1010 = vunpack.c.h.b16 %v624
        %v1011 = vunpack.c.l.b16 %v625
        %v1012 = vunpack.c.h.b16 %v625
        %v1013 = vunpack.c.l.b16 %v626
        %v1014 = vunpack.c.h.b16 %v626
        %v1015 = vunpack.c.l.b16 %v627
        %v1016 = vunpack.c.h.b16 %v627
        %v1017 = vunpack.c.l.b16 %v628
        %v1018 = vunpack.c.h.b16 %v628
        %v1019 = vunpack.c.l.b16 %v629
        %v1020 = vunpack.c.h.b16 %v629
        %v1021 = vunpack.c.l.b16 %v630
        %v1022 = vunpack.c.h.b16 %v630
        %v1023 = vunpack.c.l.b16 %v631
        %v1024 = vunpack.c.h.b16 %v631
        %v1025 = vunpack.c.l.b16 %v632
        %v1026 = vunpack.c.h.b16 %v632
        %v1027 = vunpack.c.l.b16 %v633
        %v1028 = vunpack.c.h.b16 %v633
        %v1029 = vunpack.c.l.b16 %v634
        %v1030 = vunpack.c.h.b16 %v634
        %v1031 = vunpack.c.l.b16 %v635
        %v1032 = vunpack.c.h.b16 %v635
        %v1033 = vunpack.c.l.b16 %v636
        %v1034 = vunpack.c.h.b16 %v636
        %v1035 = vunpack.c.l.b16 %v637
        %v1036 = vunpack.c.h.b16 %v637
        %v1037 = vunpack.c.l.b16 %v638
        %v1038 = vunpack.c.h.b16 %v638
        %v1039 = vunpack.c.l.b16 %v639
        %v1040 = vunpack.c.h.b16 %v639
        %v1041 = vunpack.c.l.b16 %v640
        %v1042 = vunpack.c.h.b16 %v640
        %v1043 = vunpack.c.l.b16 %v641
        %v1044 = vunpack.c.h.b16 %v641
        %v1045 = vunpack.c.l.b16 %v642
        %v1046 = vunpack.c.h.b16 %v642
        %v1047 = vunpack.c.l.b16 %v643
        %v1048 = vunpack.c.h.b16 %v643
        %v1049 = vunpack.c.l.b16 %v644
        %v1050 = vunpack.c.h.b16 %v644
        %v1051 = vpack.c.b16 %v799, %v795
        %v1052 = vpack.c.b16 %v800, %v796
        %v1053 = vpack.c.b16 %v801, %v797
        %v1054 = vpack.c.b16 %v802, %v798
        %v1055 = vpack.c.b16 %v807, %v803
        %v1056 = vpack.c.b16 %v808, %v804
        %v1057 = vpack.c.b16 %v809, %v805
        %v1058 = vpack.c.b16 %v810, %v806
        %v1059 = vpack.c.b16 %v815, %v811
        %v1060 = vpack.c.b16 %v816, %v812
        %v1061 = vpack.c.b16 %v817, %v813
        %v1062 = vpack.c.b16 %v818, %v814
        %v1063 = vpack.c.b16 %v823, %v819
        %v1064 = vpack.c.b16 %v824, %v820
        %v1065 = vpack.c.b16 %v825, %v821
        %v1066 = vpack.c.b16 %v826, %v822
        %v1067 = vpack.c.b16 %v831, %v827
        %v1068 = vpack.c.b16 %v832, %v828
        %v1069 = vpack.c.b16 %v833, %v829
        %v1070 = vpack.c.b16 %v834, %v830
        %v1071 = vpack.c.b16 %v839, %v835
        %v1072 = vpack.c.b16 %v840, %v836
        %v1073 = vpack.c.b16 %v841, %v837
        %v1074 = vpack.c.b16 %v842, %v838
        %v1075 = vpack.c.b16 %v847, %v843
        %v1076 = vpack.c.b16 %v848, %v844
        %v1077 = vpack.c.b16 %v849, %v845
        %v1078 = vpack.c.b16 %v850, %v846
        %v1079 = vpack.c.b16 %v855, %v851
        %v1080 = vpack.c.b16 %v856, %v852
        %v1081 = vpack.c.b16 %v857, %v853
        %v1082 = vpack.c.b16 %v858, %v854
        %v1083 = vpack.c.b16 %v863, %v859
        %v1084 = vpack.c.b16 %v864, %v860
        %v1085 = vpack.c.b16 %v865, %v861
        %v1086 = vpack.c.b16 %v866, %v862
        %v1087 = vpack.c.b16 %v871, %v867
        %v1088 = vpack.c.b16 %v872, %v868
        %v1089 = vpack.c.b16 %v873, %v869
        %v1090 = vpack.c.b16 %v874, %v870
        %v1091 = vpack.c.b16 %v879, %v875
        %v1092 = vpack.c.b16 %v880, %v876
        %v1093 = vpack.c.b16 %v881, %v877
        %v1094 = vpack.c.b16 %v882, %v878
        %v1095 = vpack.c.b16 %v887, %v883
        %v1096 = vpack.c.b16 %v888, %v884
        %v1097 = vpack.c.b16 %v889, %v885
        %v1098 = vpack.c.b16 %v890, %v886
        %v1099 = vpack.c.b16 %v895, %v891
        %v1100 = vpack.c.b16 %v896, %v892
        %v1101 = vpack.c.b16 %v897, %v893
        %v1102 = vpack.c.b16 %v898, %v894
        %v1103 = vpack.c.b16 %v903, %v899
        %v1104 = vpack.c.b16 %v904, %v900
        %v1105 = vpack.c.b16 %v905, %v901
        %v1106 = vpack.c.b16 %v906, %v902
        %v1107 = vpack.c.b16 %v911, %v907
        %v1108 = vpack.c.b16 %v912, %v908
        %v1109 = vpack.c.b16 %v913, %v909
        %v1110 = vpack.c.b16 %v914, %v910
        %v1111 = vpack.c.b16 %v919, %v915
        %v1112 = vpack.c.b16 %v920, %v916
        %v1113 = vpack.c.b16 %v921, %v917
        %v1114 = vpack.c.b16 %v922, %v918
        %v1115 = vpack.c.b16 %v927, %v923
        %v1116 = vpack.c.b16 %v928, %v924
        %v1117 = vpack.c.b16 %v929, %v925
        %v1118 = vpack.c.b16 %v930, %v926
        %v1119 = vpack.c.b16 %v935, %v931
        %v1120 = vpack.c.b16 %v936, %v932
        %v1121 = vpack.c.b16 %v937, %v933
        %v1122 = vpack.c.b16 %v938, %v934
        %v1123 = vpack.c.b16 %v943, %v939
        %v1124 = vpack.c.b16 %v944, %v940
        %v1125 = vpack.c.b16 %v945, %v941
        %v1126 = vpack.c.b16 %v946, %v942
        %v1127 = vpack.c.b16 %v951, %v947
        %v1128 = vpack.c.b16 %v952, %v948
        %v1129 = vpack.c.b16 %v953, %v949
        %v1130 = vpack.c.b16 %v954, %v950
        %v1131 = vpack.c.b16 %v959, %v955
        %v1132 = vpack.c.b16 %v960, %v956
        %v1133 = vpack.c.b16 %v961, %v957
        %v1134 = vpack.c.b16 %v962, %v958
        %v1135 = vpack.c.b16 %v967, %v963
        %v1136 = vpack.c.b16 %v968, %v964
        %v1137 = vpack.c.b16 %v969, %v965
        %v1138 = vpack.c.b16 %v970, %v966
        %v1139 = vpack.c.b16 %v975, %v971
        %v1140 = vpack.c.b16 %v976, %v972
        %v1141 = vpack.c.b16 %v977, %v973
        %v1142 = vpack.c.b16 %v978, %v974
        %v1143 = vpack.c.b16 %v983, %v979
        %v1144 = vpack.c.b16 %v984, %v980
        %v1145 = vpack.c.b16 %v985, %v981
        %v1146 = vpack.c.b16 %v986, %v982
        %v1147 = vpack.c.b16 %v991, %v987
        %v1148 = vpack.c.b16 %v992, %v988
        %v1149 = vpack.c.b16 %v993, %v989
        %v1150 = vpack.c.b16 %v994, %v990
        %v1151 = vpack.c.b16 %v999, %v995
        %v1152 = vpack.c.b16 %v1000, %v996
        %v1153 = vpack.c.b16 %v1001, %v997
        %v1154 = vpack.c.b16 %v1002, %v998
        %v1155 = vpack.c.b16 %v1007, %v1003
        %v1156 = vpack.c.b16 %v1008, %v1004
        %v1157 = vpack.c.b16 %v1009, %v1005
        %v1158 = vpack.c.b16 %v1010, %v1006
        %v1159 = vpack.c.b16 %v1015, %v1011
        %v1160 = vpack.c.b16 %v1016, %v1012
        %v1161 = vpack.c.b16 %v1017, %v1013
        %v1162 = vpack.c.b16 %v1018, %v1014
        %v1163 = vpack.c.b16 %v1023, %v1019
        %v1164 = vpack.c.b16 %v1024, %v1020
        %v1165 = vpack.c.b16 %v1025, %v1021
        %v1166 = vpack.c.b16 %v1026, %v1022
        %v1167 = vpack.c.b16 %v1031, %v1027
        %v1168 = vpack.c.b16 %v1032, %v1028
        %v1169 = vpack.c.b16 %v1033, %v1029
        %v1170 = vpack.c.b16 %v1034, %v1030
        %v1171 = vpack.c.b16 %v1039, %v1035
        %v1172 = vpack.c.b16 %v1040, %v1036
        %v1173 = vpack.c.b16 %v1041, %v1037
        %v1174 = vpack.c.b16 %v1042, %v1038
        %v1175 = vpack.c.b16 %v1047, %v1043
        %v1176 = vpack.c.b16 %v1048, %v1044
        %v1177 = vpack.c.b16 %v1049, %v1045
        %v1178 = vpack.c.b16 %v1050, %v1046
        %1307 = vmatprep.subr.bf16.mxu0 %v1080
        %1308 = vmatpush1.bf16.msra.mxu0 %v1079
        %1309 = vmatprep.subr.bf16.mxu0 %v1076
        %1310 = vmatpush1.bf16.msra.mxu0 %v1075
        %1311 = vmatprep.subr.bf16.mxu0 %v1072
        %1312 = vmatpush1.bf16.msra.mxu0 %v1071
        %1313 = vmatprep.subr.bf16.mxu0 %v1068
        %1314 = vmatpush1.bf16.msra.mxu0 %v1067
        %1315 = vmatprep.subr.bf16.mxu0 %v1064
        %1316 = vmatpush1.bf16.msra.mxu0 %v1063
        %1317 = vmatprep.subr.bf16.mxu0 %v1060
        %1318 = vmatpush1.bf16.msra.mxu0 %v1059
        %1319 = vmatprep.subr.bf16.mxu0 %v1056
        %1320 = vmatpush1.bf16.msra.mxu0 %v1055
        %1321 = vmatprep.subr.bf16.mxu0 %v1052
        %1322 = vmatpush1.bf16.msra.mxu0 %v1051
        %1323 = vmatprep.subr.bf16.mxu0 %v1112
        %1324 = vmatpush2.bf16.msra.mxu0 %v1111
        %1325 = vmatprep.subr.bf16.mxu0 %v1108
        %1326 = vmatpush2.bf16.msra.mxu0 %v1107
        %1327 = vmatprep.subr.bf16.mxu0 %v1104
        %1328 = vmatpush2.bf16.msra.mxu0 %v1103
        %1329 = vmatprep.subr.bf16.mxu0 %v1100
        %1330 = vmatpush2.bf16.msra.mxu0 %v1099
        %1331 = vmatprep.subr.bf16.mxu0 %v1096
        %1332 = vmatpush2.bf16.msra.mxu0 %v1095
        %1333 = vmatprep.subr.bf16.mxu0 %v1092
        %1334 = vmatpush2.bf16.msra.mxu0 %v1091
        %1335 = vmatprep.subr.bf16.mxu0 %v1088
        %1336 = vmatpush2.bf16.msra.mxu0 %v1087
        %1337 = vmatprep.subr.bf16.mxu0 %v1084
        %1338 = vmatpush2.bf16.msra.mxu0 %v1083
        %1339 = vmatprep.mubr.bf16.mxu0 %v514
        %1340 = vmatmul.mubr.bf16.gmra.mxu0 %v513
        %v1341 = vpop.f32.mrf.mxu0
        %v1342 = vadd.f32 %v650, %v1341
        %v1343 = vpop.f32.mrf.mxu0
        %v1344 = vadd.f32 %v654, %v1343
        %v1345 = vpop.f32.mrf.mxu0
        %v1346 = vpop.f32.mrf.mxu0
        %1347 = vdwg.mxu0
        %1348 = vmatprep.subr.bf16.mxu0 %v1144
        %1349 = vmatpush1.bf16.msra.mxu0 %v1143
        %1350 = vmatprep.subr.bf16.mxu0 %v1140
        %1351 = vmatpush1.bf16.msra.mxu0 %v1139
        %1352 = vmatprep.subr.bf16.mxu0 %v1136
        %1353 = vmatpush1.bf16.msra.mxu0 %v1135
        %1354 = vmatprep.subr.bf16.mxu0 %v1132
        %1355 = vmatpush1.bf16.msra.mxu0 %v1131
        %1356 = vmatprep.subr.bf16.mxu0 %v1128
        %1357 = vmatpush1.bf16.msra.mxu0 %v1127
        %1358 = vmatprep.subr.bf16.mxu0 %v1124
        %1359 = vmatpush1.bf16.msra.mxu0 %v1123
        %1360 = vmatprep.subr.bf16.mxu0 %v1120
        %1361 = vmatpush1.bf16.msra.mxu0 %v1119
        %1362 = vmatprep.subr.bf16.mxu0 %v1116
        %1363 = vmatpush1.bf16.msra.mxu0 %v1115
        %1364 = vmatprep.subr.bf16.mxu0 %v1176
        %1365 = vmatpush2.bf16.msra.mxu0 %v1175
        %1366 = vmatprep.subr.bf16.mxu0 %v1172
        %1367 = vmatpush2.bf16.msra.mxu0 %v1171
        %1368 = vmatprep.subr.bf16.mxu0 %v1168
        %1369 = vmatpush2.bf16.msra.mxu0 %v1167
        %1370 = vmatprep.subr.bf16.mxu0 %v1164
        %1371 = vmatpush2.bf16.msra.mxu0 %v1163
        %1372 = vmatprep.subr.bf16.mxu0 %v1160
        %1373 = vmatpush2.bf16.msra.mxu0 %v1159
        %1374 = vmatprep.subr.bf16.mxu0 %v1156
        %1375 = vmatpush2.bf16.msra.mxu0 %v1155
        %1376 = vmatprep.subr.bf16.mxu0 %v1152
        %1377 = vmatpush2.bf16.msra.mxu0 %v1151
        %1378 = vmatprep.subr.bf16.mxu0 %v1148
        %1379 = vmatpush2.bf16.msra.mxu0 %v1147
        %1380 = vmatprep.mubr.bf16.mxu0 %v516
        %1381 = vmatmul.mubr.bf16.gmra.mxu0 %v515
        %v1382 = vpop.f32.mrf.mxu0
        %v1383 = vadd.f32 %v1342, %v1382
        %v1384 = vpop.f32.mrf.mxu0
        %v1385 = vadd.f32 %v1344, %v1384
        %v1386 = vpop.f32.mrf.mxu0
        %v1387 = vpop.f32.mrf.mxu0
        %1388 = vdwg.mxu0
        %1389 = vmatprep.subr.bf16.mxu0 %v1082
        %1390 = vmatpush1.bf16.msra.mxu0 %v1081
        %1391 = vmatprep.subr.bf16.mxu0 %v1078
        %1392 = vmatpush1.bf16.msra.mxu0 %v1077
        %1393 = vmatprep.subr.bf16.mxu0 %v1074
        %1394 = vmatpush1.bf16.msra.mxu0 %v1073
        %1395 = vmatprep.subr.bf16.mxu0 %v1070
        %1396 = vmatpush1.bf16.msra.mxu0 %v1069
        %1397 = vmatprep.subr.bf16.mxu0 %v1066
        %1398 = vmatpush1.bf16.msra.mxu0 %v1065
        %1399 = vmatprep.subr.bf16.mxu0 %v1062
        %1400 = vmatpush1.bf16.msra.mxu0 %v1061
        %1401 = vmatprep.subr.bf16.mxu0 %v1058
        %1402 = vmatpush1.bf16.msra.mxu0 %v1057
        %1403 = vmatprep.subr.bf16.mxu0 %v1054
        %1404 = vmatpush1.bf16.msra.mxu0 %v1053
        %1405 = vmatprep.subr.bf16.mxu0 %v1114
        %1406 = vmatpush2.bf16.msra.mxu0 %v1113
        %1407 = vmatprep.subr.bf16.mxu0 %v1110
        %1408 = vmatpush2.bf16.msra.mxu0 %v1109
        %1409 = vmatprep.subr.bf16.mxu0 %v1106
        %1410 = vmatpush2.bf16.msra.mxu0 %v1105
        %1411 = vmatprep.subr.bf16.mxu0 %v1102
        %1412 = vmatpush2.bf16.msra.mxu0 %v1101
        %1413 = vmatprep.subr.bf16.mxu0 %v1098
        %1414 = vmatpush2.bf16.msra.mxu0 %v1097
        %1415 = vmatprep.subr.bf16.mxu0 %v1094
        %1416 = vmatpush2.bf16.msra.mxu0 %v1093
        %1417 = vmatprep.subr.bf16.mxu0 %v1090
        %1418 = vmatpush2.bf16.msra.mxu0 %v1089
        %1419 = vmatprep.subr.bf16.mxu0 %v1086
        %1420 = vmatpush2.bf16.msra.mxu0 %v1085
        %1421 = vmatprep.mubr.bf16.mxu0 %v514
        %1422 = vmatmul.mubr.bf16.gmra.mxu0 %v513
        %v1423 = vpop.f32.mrf.mxu0
        %v1424 = vadd.f32 %v658, %v1423
        %v1425 = vpop.f32.mrf.mxu0
        %v1426 = vadd.f32 %v662, %v1425
        %v1427 = vpop.f32.mrf.mxu0
        %v1428 = vpop.f32.mrf.mxu0
        %1429 = vdwg.mxu0
        %1430 = vmatprep.subr.bf16.mxu0 %v1146
        %1431 = vmatpush1.bf16.msra.mxu0 %v1145
        %1432 = vmatprep.subr.bf16.mxu0 %v1142
        %1433 = vmatpush1.bf16.msra.mxu0 %v1141
        %1434 = vmatprep.subr.bf16.mxu0 %v1138
        %1435 = vmatpush1.bf16.msra.mxu0 %v1137
        %1436 = vmatprep.subr.bf16.mxu0 %v1134
        %1437 = vmatpush1.bf16.msra.mxu0 %v1133
        %1438 = vmatprep.subr.bf16.mxu0 %v1130
        %1439 = vmatpush1.bf16.msra.mxu0 %v1129
        %1440 = vmatprep.subr.bf16.mxu0 %v1126
        %1441 = vmatpush1.bf16.msra.mxu0 %v1125
        %1442 = vmatprep.subr.bf16.mxu0 %v1122
        %1443 = vmatpush1.bf16.msra.mxu0 %v1121
        %1444 = vmatprep.subr.bf16.mxu0 %v1118
        %1445 = vmatpush1.bf16.msra.mxu0 %v1117
        %1446 = vmatprep.subr.bf16.mxu0 %v1178
        %1447 = vmatpush2.bf16.msra.mxu0 %v1177
        %1448 = vmatprep.subr.bf16.mxu0 %v1174
        %1449 = vmatpush2.bf16.msra.mxu0 %v1173
        %1450 = vmatprep.subr.bf16.mxu0 %v1170
        %1451 = vmatpush2.bf16.msra.mxu0 %v1169
        %1452 = vmatprep.subr.bf16.mxu0 %v1166
        %1453 = vmatpush2.bf16.msra.mxu0 %v1165
        %1454 = vmatprep.subr.bf16.mxu0 %v1162
        %1455 = vmatpush2.bf16.msra.mxu0 %v1161
        %1456 = vmatprep.subr.bf16.mxu0 %v1158
        %1457 = vmatpush2.bf16.msra.mxu0 %v1157
        %1458 = vmatprep.subr.bf16.mxu0 %v1154
        %1459 = vmatpush2.bf16.msra.mxu0 %v1153
        %1460 = vmatprep.subr.bf16.mxu0 %v1150
        %1461 = vmatpush2.bf16.msra.mxu0 %v1149
        %1462 = vmatprep.mubr.bf16.mxu0 %v516
        %1463 = vmatmul.mubr.bf16.gmra.mxu0 %v515
        %v1464 = vpop.f32.mrf.mxu0
        %v1465 = vadd.f32 %v1424, %v1464
        %v1466 = vpop.f32.mrf.mxu0
        %v1467 = vadd.f32 %v1426, %v1466
        %v1468 = vpop.f32.mrf.mxu0
        %v1469 = vpop.f32.mrf.mxu0
        %1470 = vdwg.mxu0
        %v1471 = vpack.c.bf16 %v1383, %v1383
        %v1472 = vpack.c.bf16 %v1385, %v1385
        %v1473 = vpack.c.bf16 %v1465, %v1465
        %v1474 = vpack.c.bf16 %v1467, %v1467
        %v1475 = vld [vmem:[#allocation10] sm:$0xf]
        %v1476 = vld [vmem:[#allocation10 + $0x4] sm:$0xf]
        %v1477 = vld [vmem:[#allocation10 + $0x8] sm:$0xf]
        %v1478 = vld [vmem:[#allocation10 + $0xc] sm:$0xf]
        %v1479 = vld [vmem:[#allocation10 + $0x10] sm:$0xf]
        %v1480 = vld [vmem:[#allocation10 + $0x14] sm:$0xf]
        %v1481 = vld [vmem:[#allocation10 + $0x18] sm:$0xf]
        %v1482 = vld [vmem:[#allocation10 + $0x1c] sm:$0xf]
        %v1483 = vld [vmem:[#allocation10 + $0x20] sm:$0xf]
        %v1484 = vld [vmem:[#allocation10 + $0x24] sm:$0xf]
        %v1485 = vld [vmem:[#allocation10 + $0x28] sm:$0xf]
        %v1486 = vld [vmem:[#allocation10 + $0x2c] sm:$0xf]
        %v1487 = vld [vmem:[#allocation10 + $0x30] sm:$0xf]
        %v1488 = vld [vmem:[#allocation10 + $0x34] sm:$0xf]
        %v1489 = vld [vmem:[#allocation10 + $0x38] sm:$0xf]
        %v1490 = vld [vmem:[#allocation10 + $0x3c] sm:$0xf]
        %v1491 = vld [vmem:[#allocation10 + $0x40] sm:$0xf]
        %v1492 = vld [vmem:[#allocation10 + $0x44] sm:$0xf]
        %v1493 = vld [vmem:[#allocation10 + $0x48] sm:$0xf]
        %v1494 = vld [vmem:[#allocation10 + $0x4c] sm:$0xf]
        %v1495 = vld [vmem:[#allocation10 + $0x50] sm:$0xf]
        %v1496 = vld [vmem:[#allocation10 + $0x54] sm:$0xf]
        %v1497 = vld [vmem:[#allocation10 + $0x58] sm:$0xf]
        %v1498 = vld [vmem:[#allocation10 + $0x5c] sm:$0xf]
        %v1499 = vld [vmem:[#allocation10 + $0x60] sm:$0xf]
        %v1500 = vld [vmem:[#allocation10 + $0x64] sm:$0xf]
        %v1501 = vld [vmem:[#allocation10 + $0x68] sm:$0xf]
        %v1502 = vld [vmem:[#allocation10 + $0x6c] sm:$0xf]
        %v1503 = vld [vmem:[#allocation10 + $0x70] sm:$0xf]
        %v1504 = vld [vmem:[#allocation10 + $0x74] sm:$0xf]
        %v1505 = vld [vmem:[#allocation10 + $0x78] sm:$0xf]
        %v1506 = vld [vmem:[#allocation10 + $0x7c] sm:$0xf]
        %v1507 = vld [vmem:[#allocation10 + $0x80] sm:$0xf]
        %v1508 = vld [vmem:[#allocation10 + $0x84] sm:$0xf]
        %v1509 = vld [vmem:[#allocation10 + $0x88] sm:$0xf]
        %v1510 = vld [vmem:[#allocation10 + $0x8c] sm:$0xf]
        %v1511 = vld [vmem:[#allocation10 + $0x90] sm:$0xf]
        %v1512 = vld [vmem:[#allocation10 + $0x94] sm:$0xf]
        %v1513 = vld [vmem:[#allocation10 + $0x98] sm:$0xf]
        %v1514 = vld [vmem:[#allocation10 + $0x9c] sm:$0xf]
        %v1515 = vld [vmem:[#allocation10 + $0xa0] sm:$0xf]
        %v1516 = vld [vmem:[#allocation10 + $0xa4] sm:$0xf]
        %v1517 = vld [vmem:[#allocation10 + $0xa8] sm:$0xf]
        %v1518 = vld [vmem:[#allocation10 + $0xac] sm:$0xf]
        %v1519 = vld [vmem:[#allocation10 + $0xb0] sm:$0xf]
        %v1520 = vld [vmem:[#allocation10 + $0xb4] sm:$0xf]
        %v1521 = vld [vmem:[#allocation10 + $0xb8] sm:$0xf]
        %v1522 = vld [vmem:[#allocation10 + $0xbc] sm:$0xf]
        %v1523 = vld [vmem:[#allocation10 + $0xc0] sm:$0xf]
        %v1524 = vld [vmem:[#allocation10 + $0xc4] sm:$0xf]
        %v1525 = vld [vmem:[#allocation10 + $0xc8] sm:$0xf]
        %v1526 = vld [vmem:[#allocation10 + $0xcc] sm:$0xf]
        %v1527 = vld [vmem:[#allocation10 + $0xd0] sm:$0xf]
        %v1528 = vld [vmem:[#allocation10 + $0xd4] sm:$0xf]
        %v1529 = vld [vmem:[#allocation10 + $0xd8] sm:$0xf]
        %v1530 = vld [vmem:[#allocation10 + $0xdc] sm:$0xf]
        %v1531 = vld [vmem:[#allocation10 + $0xe0] sm:$0xf]
        %v1532 = vld [vmem:[#allocation10 + $0xe4] sm:$0xf]
        %v1533 = vld [vmem:[#allocation10 + $0xe8] sm:$0xf]
        %v1534 = vld [vmem:[#allocation10 + $0xec] sm:$0xf]
        %v1535 = vld [vmem:[#allocation10 + $0xf0] sm:$0xf]
        %v1536 = vld [vmem:[#allocation10 + $0xf4] sm:$0xf]
        %v1537 = vld [vmem:[#allocation10 + $0xf8] sm:$0xf]
        %v1538 = vld [vmem:[#allocation10 + $0xfc] sm:$0xf]
        %v1539 = vld [vmem:[%s6] sm:$0x1]
        %v1541 = vlaneseq
        %v1542 = vshrl.u32 %v1541, 7
        %v1543 = vsub.s32 0, %v1542
        %v1544 = vrot.slane %v1539, %v1543
        %v1610 = vunpack.c.l.b16 %v1475
        %v1611 = vunpack.c.l.b16 %v1476
        %v1612 = vunpack.c.l.b16 %v1477
        %v1613 = vunpack.c.l.b16 %v1478
        %v1614 = vunpack.c.l.b16 %v1479
        %v1615 = vunpack.c.l.b16 %v1480
        %v1616 = vunpack.c.l.b16 %v1481
        %v1617 = vunpack.c.l.b16 %v1482
        %v1618 = vunpack.c.l.b16 %v1483
        %v1619 = vunpack.c.l.b16 %v1484
        %v1620 = vunpack.c.l.b16 %v1485
        %v1621 = vunpack.c.l.b16 %v1486
        %v1622 = vunpack.c.l.b16 %v1487
        %v1623 = vunpack.c.l.b16 %v1488
        %v1624 = vunpack.c.l.b16 %v1489
        %v1625 = vunpack.c.l.b16 %v1490
        %v1626 = vunpack.c.l.b16 %v1491
        %v1627 = vunpack.c.l.b16 %v1492
        %v1628 = vunpack.c.l.b16 %v1493
        %v1629 = vunpack.c.l.b16 %v1494
        %v1630 = vunpack.c.l.b16 %v1495
        %v1631 = vunpack.c.l.b16 %v1496
        %v1632 = vunpack.c.l.b16 %v1497
        %v1633 = vunpack.c.l.b16 %v1498
        %v1634 = vunpack.c.l.b16 %v1499
        %v1635 = vunpack.c.l.b16 %v1500
        %v1636 = vunpack.c.l.b16 %v1501
        %v1637 = vunpack.c.l.b16 %v1502
        %v1638 = vunpack.c.l.b16 %v1503
        %v1639 = vunpack.c.l.b16 %v1504
        %v1640 = vunpack.c.l.b16 %v1505
        %v1641 = vunpack.c.l.b16 %v1506
        %v1642 = vunpack.c.l.b16 %v1507
        %v1643 = vunpack.c.l.b16 %v1508
        %v1644 = vunpack.c.l.b16 %v1509
        %v1645 = vunpack.c.l.b16 %v1510
        %v1646 = vunpack.c.l.b16 %v1511
        %v1647 = vunpack.c.l.b16 %v1512
        %v1648 = vunpack.c.l.b16 %v1513
        %v1649 = vunpack.c.l.b16 %v1514
        %v1650 = vunpack.c.l.b16 %v1515
        %v1651 = vunpack.c.l.b16 %v1516
        %v1652 = vunpack.c.l.b16 %v1517
        %v1653 = vunpack.c.l.b16 %v1518
        %v1654 = vunpack.c.l.b16 %v1519
        %v1655 = vunpack.c.l.b16 %v1520
        %v1656 = vunpack.c.l.b16 %v1521
        %v1657 = vunpack.c.l.b16 %v1522
        %v1658 = vunpack.c.l.b16 %v1523
        %v1659 = vunpack.c.l.b16 %v1524
        %v1660 = vunpack.c.l.b16 %v1525
        %v1661 = vunpack.c.l.b16 %v1526
        %v1662 = vunpack.c.l.b16 %v1527
        %v1663 = vunpack.c.l.b16 %v1528
        %v1664 = vunpack.c.l.b16 %v1529
        %v1665 = vunpack.c.l.b16 %v1530
        %v1666 = vunpack.c.l.b16 %v1531
        %v1667 = vunpack.c.l.b16 %v1532
        %v1668 = vunpack.c.l.b16 %v1533
        %v1669 = vunpack.c.l.b16 %v1534
        %v1670 = vunpack.c.l.b16 %v1535
        %v1671 = vunpack.c.l.b16 %v1536
        %v1672 = vunpack.c.l.b16 %v1537
        %v1673 = vunpack.c.l.b16 %v1538
        %v1674 = vpack.c.b16 %v1611, %v1610
        %v1675 = vpack.c.b16 %v1613, %v1612
        %v1676 = vpack.c.b16 %v1615, %v1614
        %v1677 = vpack.c.b16 %v1617, %v1616
        %v1678 = vpack.c.b16 %v1619, %v1618
        %v1679 = vpack.c.b16 %v1621, %v1620
        %v1680 = vpack.c.b16 %v1623, %v1622
        %v1681 = vpack.c.b16 %v1625, %v1624
        %v1682 = vpack.c.b16 %v1627, %v1626
        %v1683 = vpack.c.b16 %v1629, %v1628
        %v1684 = vpack.c.b16 %v1631, %v1630
        %v1685 = vpack.c.b16 %v1633, %v1632
        %v1686 = vpack.c.b16 %v1635, %v1634
        %v1687 = vpack.c.b16 %v1637, %v1636
        %v1688 = vpack.c.b16 %v1639, %v1638
        %v1689 = vpack.c.b16 %v1641, %v1640
        %v1690 = vpack.c.b16 %v1643, %v1642
        %v1691 = vpack.c.b16 %v1645, %v1644
        %v1692 = vpack.c.b16 %v1647, %v1646
        %v1693 = vpack.c.b16 %v1649, %v1648
        %v1694 = vpack.c.b16 %v1651, %v1650
        %v1695 = vpack.c.b16 %v1653, %v1652
        %v1696 = vpack.c.b16 %v1655, %v1654
        %v1697 = vpack.c.b16 %v1657, %v1656
        %v1698 = vpack.c.b16 %v1659, %v1658
        %v1699 = vpack.c.b16 %v1661, %v1660
        %v1700 = vpack.c.b16 %v1663, %v1662
        %v1701 = vpack.c.b16 %v1665, %v1664
        %v1702 = vpack.c.b16 %v1667, %v1666
        %v1703 = vpack.c.b16 %v1669, %v1668
        %v1704 = vpack.c.b16 %v1671, %v1670
        %v1705 = vpack.c.b16 %v1673, %v1672
        %1738 = vmatprep.subr.bf16.mxu0 0
        %1739 = vmatpush1.bf16.msra.mxu0 %v1681
        %1740 = vmatprep.subr.bf16.mxu0 0
        %1741 = vmatpush1.bf16.msra.mxu0 %v1680
        %1742 = vmatprep.subr.bf16.mxu0 0
        %1743 = vmatpush1.bf16.msra.mxu0 %v1679
        %1744 = vmatprep.subr.bf16.mxu0 0
        %1745 = vmatpush1.bf16.msra.mxu0 %v1678
        %1746 = vmatprep.subr.bf16.mxu0 0
        %1747 = vmatpush1.bf16.msra.mxu0 %v1677
        %1748 = vmatprep.subr.bf16.mxu0 0
        %1749 = vmatpush1.bf16.msra.mxu0 %v1676
        %1750 = vmatprep.subr.bf16.mxu0 0
        %1751 = vmatpush1.bf16.msra.mxu0 %v1675
        %1752 = vmatprep.subr.bf16.mxu0 0
        %1753 = vmatpush1.bf16.msra.mxu0 %v1674
        %1754 = vmatprep.subr.bf16.mxu0 0
        %1755 = vmatpush2.bf16.msra.mxu0 %v1689
        %1756 = vmatprep.subr.bf16.mxu0 0
        %1757 = vmatpush2.bf16.msra.mxu0 %v1688
        %1758 = vmatprep.subr.bf16.mxu0 0
        %1759 = vmatpush2.bf16.msra.mxu0 %v1687
        %1760 = vmatprep.subr.bf16.mxu0 0
        %1761 = vmatpush2.bf16.msra.mxu0 %v1686
        %1762 = vmatprep.subr.bf16.mxu0 0
        %1763 = vmatpush2.bf16.msra.mxu0 %v1685
        %1764 = vmatprep.subr.bf16.mxu0 0
        %1765 = vmatpush2.bf16.msra.mxu0 %v1684
        %1766 = vmatprep.subr.bf16.mxu0 0
        %1767 = vmatpush2.bf16.msra.mxu0 %v1683
        %1768 = vmatprep.subr.bf16.mxu0 0
        %1769 = vmatpush2.bf16.msra.mxu0 %v1682
        %1770 = vmatprep.mubr.bf16.mxu0 %v1472
        %1771 = vmatmul.mubr.bf16.gmra.mxu0 %v1471
        %v1772 = vpop.f32.mrf.mxu0
        %v1773 = vadd.f32 %v1544, %v1772
        %v1774 = vpop.f32.mrf.mxu0
        %v1775 = vpop.f32.mrf.mxu0
        %v1776 = vpop.f32.mrf.mxu0
        %1777 = vdwg.mxu0
        %1778 = vmatprep.subr.bf16.mxu0 0
        %1779 = vmatpush1.bf16.msra.mxu0 %v1697
        %1780 = vmatprep.subr.bf16.mxu0 0
        %1781 = vmatpush1.bf16.msra.mxu0 %v1696
        %1782 = vmatprep.subr.bf16.mxu0 0
        %1783 = vmatpush1.bf16.msra.mxu0 %v1695
        %1784 = vmatprep.subr.bf16.mxu0 0
        %1785 = vmatpush1.bf16.msra.mxu0 %v1694
        %1786 = vmatprep.subr.bf16.mxu0 0
        %1787 = vmatpush1.bf16.msra.mxu0 %v1693
        %1788 = vmatprep.subr.bf16.mxu0 0
        %1789 = vmatpush1.bf16.msra.mxu0 %v1692
        %1790 = vmatprep.subr.bf16.mxu0 0
        %1791 = vmatpush1.bf16.msra.mxu0 %v1691
        %1792 = vmatprep.subr.bf16.mxu0 0
        %1793 = vmatpush1.bf16.msra.mxu0 %v1690
        %1794 = vmatprep.subr.bf16.mxu0 0
        %1795 = vmatpush2.bf16.msra.mxu0 %v1705
        %1796 = vmatprep.subr.bf16.mxu0 0
        %1797 = vmatpush2.bf16.msra.mxu0 %v1704
        %1798 = vmatprep.subr.bf16.mxu0 0
        %1799 = vmatpush2.bf16.msra.mxu0 %v1703
        %1800 = vmatprep.subr.bf16.mxu0 0
        %1801 = vmatpush2.bf16.msra.mxu0 %v1702
        %1802 = vmatprep.subr.bf16.mxu0 0
        %1803 = vmatpush2.bf16.msra.mxu0 %v1701
        %1804 = vmatprep.subr.bf16.mxu0 0
        %1805 = vmatpush2.bf16.msra.mxu0 %v1700
        %1806 = vmatprep.subr.bf16.mxu0 0
        %1807 = vmatpush2.bf16.msra.mxu0 %v1699
        %1808 = vmatprep.subr.bf16.mxu0 0
        %1809 = vmatpush2.bf16.msra.mxu0 %v1698
        %1810 = vmatprep.mubr.bf16.mxu0 %v1474
        %1811 = vmatmul.mubr.bf16.gmra.mxu0 %v1473
        %v1812 = vpop.f32.mrf.mxu0
        %v1813 = vadd.f32 %v1773, %v1812
        %v1814 = vpop.f32.mrf.mxu0
        %v1815 = vpop.f32.mrf.mxu0
        %v1816 = vpop.f32.mrf.mxu0
        %1817 = vdwg.mxu0
        %v1818 = vxor.u32 %v1813, 2147483648
        %v1819 = vmul.f32 %v1818, 1.442695
        %v1820 = vpow.pop %v1819
        %v1821 = vadd.f32 %v1820, 1.0
        %v1822 = vrcp.pop %v1821
        %v1823 = vmul.f32 1.0, %v1822
        %1824 = vst [vmem:[%s349] sm:$0xff] %v1823
        %s1825 = sand.u32 %s186, 1
        %s1826 = scalar_lea.sflag [#allocation4], %s1825
        %s1827 = sand.u32 %s186, 1
        %s1828 = smul.addr %s1827, 8
        %s1829 = scalar_lea.vmem [#allocation11], %s1828
        // Predicated region
        $region69: #{tpu_custom_call.1} parent=47 // pred_check
          %p1830 = pneg %p196
        $region70: #{tpu_custom_call.1} parent=47 // pred_check_branch
          %1832 = sbr.rel (%p1830) target = $region72
        $region71: #{tpu_custom_call.1} parent=47 // pred_region
          %s1834 = ssub.s32 128, 128
          %1835 = vsyncadd %s1826, %s1834
          %s1836 = smul.addr %s26, 128
          %s1837 = scalar_lea.hbm %s7, %s1836
          %s1839 = sshll.u32 %s1829, 4
          %s1840 = int_to_ptr.vmem [resolvable:$true] %s1839
          %1842 = dma.vmem_to_hbm [thread:$0]  %s1840, 128, %s1837, %s1826
        $region72: #{tpu_custom_call.1} parent=47 // pred_fallthru
          _
      $region48: #{tpu_custom_call.1} parent=5 // pred_fallthru
        _
      %p1843 = scmp.le.s32.totalorder 2, %s21
      // Predicated region
      $region73: #{tpu_custom_call.1} parent=5 // pred_check
        %p1844 = pneg %p1843
      $region74: #{tpu_custom_call.1} parent=5 // pred_check_branch
        %1846 = sbr.rel (%p1844) target = $region76
      $region75: #{tpu_custom_call.1} parent=5 // pred_region
        %s1847 = ssub.s32 %s21, 2
        // Predicated region
        $region77: #{tpu_custom_call.1} parent=75 // pred_check
          %p1848 = pneg %p202
        $region78: #{tpu_custom_call.1} parent=75 // pred_check_branch
          %1850 = sbr.rel (%p1848) target = $region80
        $region79: #{tpu_custom_call.1} parent=75 // pred_region
          %s1851 = sand.u32 %s187, 1
          %s1852 = scalar_lea.sflag [#allocation4], %s1851
          %s1853 = sand.u32 %s187, 1
          %s1854 = smul.addr %s1853, 8
          %s1855 = scalar_lea.vmem [#allocation11], %s1854
          %1856 = dma.done %s1852, 128
        $region80: #{tpu_custom_call.1} parent=75 // pred_fallthru
          _
      $region76: #{tpu_custom_call.1} parent=5 // pred_fallthru
        _
    $region6: #{tpu_custom_call.1} parent=1 // loop_footer
      %s25 = sadd.s32 1, %s21
    $region7: #{tpu_custom_call.1} parent=1 // loop_footer_branch
      %20 = sbr.rel target = $region3
    $region8: #{tpu_custom_call.1} parent=1 // loop_exit
      _
    %1857 = vsyncpa [#allocation3], 1
    %s1858 = scalar_lea.sflag [#allocation3], 1
    %1859 = vsyncpa %s1858, 1
    %1860 = vsyncpa [#allocation6], 1
    %1861 = vsyncpa [#allocation9], 1
    %1862 = vsyncpa [#allocation4], 1
    %s1863 = scalar_lea.sflag [#allocation4], 1
    %1864 = vsyncpa %s1863, 1

</llo_original>
